<compile_context>
chip_gen: v5e
topology: v5e:2x2
jax: 0.10.0
libtpu: 0.0.40
codegen_flags: <defaults>
</compile_context>

<pallas_src>
import functools

import jax
import jax.numpy as jnp
from jax.experimental import pallas as pl
from jax.experimental.pallas import tpu as pltpu

LATENT = 16
HIDDEN = 256
IN_DIM = 784          # 28 * 28


def vae_kernel(x_ref, w1_ref, b1_ref, w2_ref, b2_ref, eps_ref,
               w3_ref, b3_ref, w4_ref, b4_ref,
               recon_ref, h_ref):
    # ---- encoder: Linear(784, 256) -> ReLU -> Linear(256, 32) ----
    # x arrives as raw f32 rows; cast to bf16 in-kernel (f32 MXU accumulation
    # via preferred_element_type).
    x = x_ref[...].astype(jnp.bfloat16)                                 # (TM, 784)
    h1 = jnp.dot(x, w1_ref[...], preferred_element_type=jnp.float32) + b1_ref[...]
    h1 = jnp.maximum(h1, 0.0).astype(jnp.bfloat16)                      # (TM, 256)
    h = jnp.dot(h1, w2_ref[...], preferred_element_type=jnp.float32) + b2_ref[...]

    mu = h[:, :LATENT]                                                  # (TM, 16) f32
    logvar = h[:, LATENT:]                                              # (TM, 16) f32

    # ---- reparameterize: z = mu + eps * exp(0.5 * logvar)  (f32 VPU/EUP) ----
    std = jnp.exp(0.5 * logvar)
    z = (mu + eps_ref[...] * std).astype(jnp.bfloat16)                  # (TM, 16)

    # ---- decoder: Linear(16, 256) -> ReLU -> Linear(256, 784) -> Sigmoid ----
    d1 = jnp.dot(z, w3_ref[...], preferred_element_type=jnp.float32) + b3_ref[...]
    d1 = jnp.maximum(d1, 0.0).astype(jnp.bfloat16)                      # (TM, 256)
    logits = jnp.dot(d1, w4_ref[...], preferred_element_type=jnp.float32) + b4_ref[...]

    # bf16, 784-lane store: halves recon HBM bytes vs f32 and drops the pad
    # columns (the dominant traffic term).  Sigmoid stays f32 on the EUP so the
    # same kernel is right for v5e too; the bf16 cast feeds the store directly.
    # TODO(synk): if a BCE loss consumes recon downstream, return `logits`
    # instead of the bf16 sigmoid output (saturation near 0/1 loses precision).
    recon_ref[...] = jax.nn.sigmoid(logits).astype(jnp.bfloat16)        # (TM, 784)
    h_ref[...] = h                                                      # [mu | logvar]


def _round_up(n, m):
    return -(-n // m) * m


def _default_tm(batch):
    """Batch tile: clamp to the batch for tiny B (no wasted padded rows),
    split into >= 2 tiles once B > 128 (so the 'parallel' grid axis keeps both
    v7x TensorCores busy), cap at 256 for large batches (2x256 MXU on v6e/v7x,
    128-multiple for v5e's 4x128 MXU)."""
    b8 = _round_up(batch, 8)
    if b8 <= 128:
        return b8
    if b8 <= 512:
        return _round_up(b8 // 2, 8)
    return 256


@functools.partial(jax.jit, static_argnames=("tm",))
def vae_forward(x_img, params, eps, *, tm=None):
    """x_img: (B, 1, 28, 28) f32 NCHW.
    Returns (recon (B, 784) bf16, mu (B, 16) f32, logvar (B, 16) f32)."""
    w1, b1, w2, b2, w3, b3, w4, b4 = params

    B = x_img.shape[0]
    if tm is None:
        tm = _default_tm(B)
    b_pad = pl.cdiv(B, tm) * tm

    # Flatten only (free reshape); no feature padding and no wrapper-side cast:
    # the kernel reads raw f32 rows and casts to bf16 itself.
    x = x_img.reshape(B, IN_DIM).astype(jnp.float32)
    eps = eps.astype(jnp.float32)
    if b_pad != B:
        x = jnp.pad(x, ((0, b_pad - B), (0, 0)))
        eps = jnp.pad(eps, ((0, b_pad - B), (0, 0)))

    # bf16 weights (f32 accumulation in-kernel); unpadded shapes throughout.
    w1b = w1.astype(jnp.bfloat16)
    w2b = w2.astype(jnp.bfloat16)
    w3b = w3.astype(jnp.bfloat16)
    w4b = w4.astype(jnp.bfloat16)

    const = lambda i: (0, 0)     # weights/biases: same block every step -> VMEM-resident
    batch = lambda i: (i, 0)     # batch-tiled activations

    # NOTE: weight specs could add pipeline_mode=pl.Buffered(1) to skip double
    # buffering (~1 MB VMEM); at tm <= 256 total VMEM use is far below the
    # scoped default on all generations, so default buffering is kept.
    recon_pad, h_out = pl.pallas_call(
        vae_kernel,
        grid=(b_pad // tm,),
        out_shape=(
            jax.ShapeDtypeStruct((b_pad, IN_DIM), jnp.bfloat16),
            jax.ShapeDtypeStruct((b_pad, 2 * LATENT), jnp.float32),
        ),
        in_specs=[
            pl.BlockSpec((tm, IN_DIM), batch),            # x (raw f32)
            pl.BlockSpec((IN_DIM, HIDDEN), const),        # w1
            pl.BlockSpec((1, HIDDEN), const),             # b1
            pl.BlockSpec((HIDDEN, 2 * LATENT), const),    # w2
            pl.BlockSpec((1, 2 * LATENT), const),         # b2
            pl.BlockSpec((tm, LATENT), batch),            # eps
            pl.BlockSpec((LATENT, HIDDEN), const),        # w3
            pl.BlockSpec((1, HIDDEN), const),             # b3
            pl.BlockSpec((HIDDEN, IN_DIM), const),        # w4
            pl.BlockSpec((1, IN_DIM), const),             # b4
        ],
        out_specs=(
            pl.BlockSpec((tm, IN_DIM), batch),            # recon (bf16, lane-dense 784)
            pl.BlockSpec((tm, 2 * LATENT), batch),        # h = [mu | logvar]
        ),
        compiler_params=pltpu.CompilerParams(
            dimension_semantics=("parallel",),            # shard batch tiles across TCs
        ),
    )(x, w1b, b1, w2b, b2, eps, w3b, b3, w4b, b4)

    recon = recon_pad if b_pad == B else recon_pad[:B]
    h_out = h_out if b_pad == B else h_out[:B]
    mu = h_out[:, :LATENT]
    logvar = h_out[:, LATENT:]
    return recon, mu, logvar


def init_params(key):
    """Deterministic parameter init matching nn.Linear shapes (stored transposed: (in, out))."""
    ks = jax.random.split(key, 8)

    def linear(kw, kb, fan_in, fan_out):
        bound = 1.0 / jnp.sqrt(fan_in)
        w = jax.random.uniform(kw, (fan_in, fan_out), jnp.float32, -bound, bound)
        b = jax.random.uniform(kb, (1, fan_out), jnp.float32, -bound, bound)
        return w, b

    w1, b1 = linear(ks[0], ks[1], IN_DIM, HIDDEN)       # encoder Linear(784, 256)
    w2, b2 = linear(ks[2], ks[3], HIDDEN, 2 * LATENT)   # encoder Linear(256, 32)
    w3, b3 = linear(ks[4], ks[5], LATENT, HIDDEN)       # decoder Linear(16, 256)
    w4, b4 = linear(ks[6], ks[7], HIDDEN, IN_DIM)       # decoder Linear(256, 784)
    return (w1, b1, w2, b2, w3, b3, w4, b4)


if __name__ == "__main__":
    key = jax.random.PRNGKey(0)
    k_params, k_x, k_eps = jax.random.split(key, 3)

    B = 8
    params = init_params(k_params)
    x_img = jax.random.uniform(k_x, (B, 1, 28, 28), jnp.float32)   # MNIST-like NCHW input
    eps = jax.random.normal(k_eps, (B, LATENT), jnp.float32)       # torch.randn_like(std)

    recon, mu, logvar = vae_forward(x_img, params, eps)
    jax.block_until_ready((recon, mu, logvar))

    # Sanity check against a pure-JAX reference that mirrors the kernel's
    # bf16-input / f32-accumulation matmuls (recon compared through its bf16
    # output precision).
    w1, b1, w2, b2, w3, b3, w4, b4 = params
    xb = x_img.reshape(B, IN_DIM).astype(jnp.bfloat16)
    h1 = jnp.maximum(jnp.dot(xb, w1.astype(jnp.bfloat16),
                             preferred_element_type=jnp.float32) + b1, 0.0)
    h = jnp.dot(h1.astype(jnp.bfloat16), w2.astype(jnp.bfloat16),
                preferred_element_type=jnp.float32) + b2
    mu_r, lv_r = h[:, :LATENT], h[:, LATENT:]
    z = (mu_r + eps * jnp.exp(0.5 * lv_r)).astype(jnp.bfloat16)
    d1 = jnp.maximum(jnp.dot(z, w3.astype(jnp.bfloat16),
                             preferred_element_type=jnp.float32) + b3, 0.0)
    rec_r = jax.nn.sigmoid(jnp.dot(d1.astype(jnp.bfloat16), w4.astype(jnp.bfloat16),
                                   preferred_element_type=jnp.float32) + b4)

    assert jnp.allclose(recon.astype(jnp.float32), rec_r, atol=2e-2), "recon mismatch"
    assert jnp.allclose(mu, mu_r, atol=2e-2), "mu mismatch"
    assert jnp.allclose(logvar, lv_r, atol=2e-2), "logvar mismatch"

    print("KERNEL_OK")
</pallas_src>

<mosaic_0001>
module attributes {stable_mosaic.version = 11 : i64} {
  func.func @vae_kernel(%arg0: i32, %arg1: memref<8x784xf32, #tpu.memory_space<vmem>>, %arg2: memref<784x256xbf16, #tpu.memory_space<vmem>>, %arg3: memref<1x256xf32, #tpu.memory_space<vmem>>, %arg4: memref<256x32xbf16, #tpu.memory_space<vmem>>, %arg5: memref<1x32xf32, #tpu.memory_space<vmem>>, %arg6: memref<8x16xf32, #tpu.memory_space<vmem>>, %arg7: memref<16x256xbf16, #tpu.memory_space<vmem>>, %arg8: memref<1x256xf32, #tpu.memory_space<vmem>>, %arg9: memref<256x784xbf16, #tpu.memory_space<vmem>>, %arg10: memref<1x784xf32, #tpu.memory_space<vmem>>, %arg11: memref<8x784xbf16, #tpu.memory_space<vmem>>, %arg12: memref<8x32xf32, #tpu.memory_space<vmem>>) attributes {dimension_semantics = [#tpu.dimension_semantics<parallel>], iteration_bounds = array<i64: 1>, scalar_prefetch = 0 : i64, scratch_operands = 0 : i64, tpu.core_type = #tpu.core_type<tc>, window_params = [{transform_indices = @transform_0, window_bounds = array<i64: 8, 784>}, {pipeline_mode = #tpu.pipeline_mode<synchronous>, transform_indices = @transform_1, window_bounds = array<i64: 784, 256>}, {pipeline_mode = #tpu.pipeline_mode<synchronous>, transform_indices = @transform_2, window_bounds = array<i64: 1, 256>}, {pipeline_mode = #tpu.pipeline_mode<synchronous>, transform_indices = @transform_3, window_bounds = array<i64: 256, 32>}, {pipeline_mode = #tpu.pipeline_mode<synchronous>, transform_indices = @transform_4, window_bounds = array<i64: 1, 32>}, {transform_indices = @transform_5, window_bounds = array<i64: 8, 16>}, {pipeline_mode = #tpu.pipeline_mode<synchronous>, transform_indices = @transform_6, window_bounds = array<i64: 16, 256>}, {pipeline_mode = #tpu.pipeline_mode<synchronous>, transform_indices = @transform_7, window_bounds = array<i64: 1, 256>}, {pipeline_mode = #tpu.pipeline_mode<synchronous>, transform_indices = @transform_8, window_bounds = array<i64: 256, 784>}, {pipeline_mode = #tpu.pipeline_mode<synchronous>, transform_indices = @transform_9, window_bounds = array<i64: 1, 784>}, {transform_indices = @transform_10, window_bounds = array<i64: 8, 784>}, {transform_indices = @transform_11, window_bounds = array<i64: 8, 32>}]} {
    %c0 = arith.constant 0 : index
    %c0_0 = arith.constant 0 : index
    %0 = vector.load %arg1[%c0, %c0_0] : memref<8x784xf32, #tpu.memory_space<vmem>>, vector<8x784xf32>
    %1 = arith.truncf %0 : vector<8x784xf32> to vector<8x784xbf16>
    %c0_1 = arith.constant 0 : index
    %c0_2 = arith.constant 0 : index
    %2 = vector.load %arg2[%c0_1, %c0_2] : memref<784x256xbf16, #tpu.memory_space<vmem>>, vector<784x256xbf16>
    %cst = arith.constant dense<0.000000e+00> : vector<8x256xf32>
    %3 = tpu.matmul %1, %2, %cst {dimension_numbers = #tpu.dot_dimension_numbers<[1], [0], [0], [1], [0, 0, 1, 1], [], []>} : vector<8x784xbf16>, vector<784x256xbf16>, vector<8x256xf32> -> vector<8x256xf32>
    %c0_3 = arith.constant 0 : index
    %c0_4 = arith.constant 0 : index
    %4 = vector.load %arg3[%c0_3, %c0_4] : memref<1x256xf32, #tpu.memory_space<vmem>>, vector<1x256xf32>
    %5 = vector.broadcast %4 : vector<1x256xf32> to vector<8x256xf32>
    %6 = arith.addf %3, %5 : vector<8x256xf32>
    %cst_5 = arith.constant 0.000000e+00 : f32
    %7 = vector.broadcast %cst_5 : f32 to vector<8x256xf32>
    %8 = arith.maximumf %6, %7 : vector<8x256xf32>
    %9 = arith.truncf %8 : vector<8x256xf32> to vector<8x256xbf16>
    %c0_6 = arith.constant 0 : index
    %c0_7 = arith.constant 0 : index
    %10 = vector.load %arg4[%c0_6, %c0_7] : memref<256x32xbf16, #tpu.memory_space<vmem>>, vector<256x32xbf16>
    %cst_8 = arith.constant dense<0.000000e+00> : vector<8x32xf32>
    %11 = tpu.matmul %9, %10, %cst_8 {dimension_numbers = #tpu.dot_dimension_numbers<[1], [0], [0], [1], [0, 0, 1, 1], [], []>} : vector<8x256xbf16>, vector<256x32xbf16>, vector<8x32xf32> -> vector<8x32xf32>
    %c0_9 = arith.constant 0 : index
    %c0_10 = arith.constant 0 : index
    %12 = vector.load %arg5[%c0_9, %c0_10] : memref<1x32xf32, #tpu.memory_space<vmem>>, vector<1x32xf32>
    %13 = vector.broadcast %12 : vector<1x32xf32> to vector<8x32xf32>
    %14 = arith.addf %11, %13 : vector<8x32xf32>
    %15 = vector.extract_strided_slice %14 {offsets = [0, 0], sizes = [8, 16], strides = [1, 1]} : vector<8x32xf32> to vector<8x16xf32>
    %16 = vector.extract_strided_slice %14 {offsets = [0, 16], sizes = [8, 16], strides = [1, 1]} : vector<8x32xf32> to vector<8x16xf32>
    %cst_11 = arith.constant 5.000000e-01 : f32
    %17 = vector.broadcast %cst_11 : f32 to vector<8x16xf32>
    %18 = arith.mulf %17, %16 : vector<8x16xf32>
    %19 = math.exp %18 : vector<8x16xf32>
    %c0_12 = arith.constant 0 : index
    %c0_13 = arith.constant 0 : index
    %20 = vector.load %arg6[%c0_12, %c0_13] : memref<8x16xf32, #tpu.memory_space<vmem>>, vector<8x16xf32>
    %21 = arith.mulf %20, %19 : vector<8x16xf32>
    %22 = arith.addf %15, %21 : vector<8x16xf32>
    %23 = arith.truncf %22 : vector<8x16xf32> to vector<8x16xbf16>
    %c0_14 = arith.constant 0 : index
    %c0_15 = arith.constant 0 : index
    %24 = vector.load %arg7[%c0_14, %c0_15] : memref<16x256xbf16, #tpu.memory_space<vmem>>, vector<16x256xbf16>
    %cst_16 = arith.constant dense<0.000000e+00> : vector<8x256xf32>
    %25 = tpu.matmul %23, %24, %cst_16 {dimension_numbers = #tpu.dot_dimension_numbers<[1], [0], [0], [1], [0, 0, 1, 1], [], []>} : vector<8x16xbf16>, vector<16x256xbf16>, vector<8x256xf32> -> vector<8x256xf32>
    %c0_17 = arith.constant 0 : index
    %c0_18 = arith.constant 0 : index
    %26 = vector.load %arg8[%c0_17, %c0_18] : memref<1x256xf32, #tpu.memory_space<vmem>>, vector<1x256xf32>
    %27 = vector.broadcast %26 : vector<1x256xf32> to vector<8x256xf32>
    %28 = arith.addf %25, %27 : vector<8x256xf32>
    %cst_19 = arith.constant 0.000000e+00 : f32
    %29 = vector.broadcast %cst_19 : f32 to vector<8x256xf32>
    %30 = arith.maximumf %28, %29 : vector<8x256xf32>
    %31 = arith.truncf %30 : vector<8x256xf32> to vector<8x256xbf16>
    %c0_20 = arith.constant 0 : index
    %c0_21 = arith.constant 0 : index
    %32 = vector.load %arg9[%c0_20, %c0_21] : memref<256x784xbf16, #tpu.memory_space<vmem>>, vector<256x784xbf16>
    %cst_22 = arith.constant dense<0.000000e+00> : vector<8x784xf32>
    %33 = tpu.matmul %31, %32, %cst_22 {dimension_numbers = #tpu.dot_dimension_numbers<[1], [0], [0], [1], [0, 0, 1, 1], [], []>} : vector<8x256xbf16>, vector<256x784xbf16>, vector<8x784xf32> -> vector<8x784xf32>
    %c0_23 = arith.constant 0 : index
    %c0_24 = arith.constant 0 : index
    %34 = vector.load %arg10[%c0_23, %c0_24] : memref<1x784xf32, #tpu.memory_space<vmem>>, vector<1x784xf32>
    %35 = vector.broadcast %34 : vector<1x784xf32> to vector<8x784xf32>
    %36 = arith.addf %33, %35 : vector<8x784xf32>
    %37 = arith.negf %36 : vector<8x784xf32>
    %38 = math.exp %37 : vector<8x784xf32>
    %cst_25 = arith.constant 1.000000e+00 : f32
    %39 = vector.broadcast %cst_25 : f32 to vector<8x784xf32>
    %40 = arith.addf %39, %38 : vector<8x784xf32>
    %41 = arith.divf %39, %40 : vector<8x784xf32>
    %42 = arith.truncf %41 : vector<8x784xf32> to vector<8x784xbf16>
    %c0_26 = arith.constant 0 : index
    %c0_27 = arith.constant 0 : index
    %43 = vector.load %arg11[%c0_26, %c0_27] : memref<8x784xbf16, #tpu.memory_space<vmem>>, vector<8x784xbf16>
    tpu.vector_store %arg11[%c0_26, %c0_27], %42 {strides = array<i32>} : memref<8x784xbf16, #tpu.memory_space<vmem>>, vector<8x784xbf16>,
    %c0_28 = arith.constant 0 : index
    %c0_29 = arith.constant 0 : index
    %44 = vector.load %arg12[%c0_28, %c0_29] : memref<8x32xf32, #tpu.memory_space<vmem>>, vector<8x32xf32>
    tpu.vector_store %arg12[%c0_28, %c0_29], %14 {strides = array<i32>} : memref<8x32xf32, #tpu.memory_space<vmem>>, vector<8x32xf32>,
    return
  }
  func.func @transform_0(%arg0: i32) -> (i32, i32) {
    %c0_i32 = arith.constant 0 : i32
    %c0_i32_0 = arith.constant 0 : i32
    return %arg0, %c0_i32 : i32, i32
  }
  func.func @transform_1(%arg0: i32) -> (i32, i32) {
    %c0_i32 = arith.constant 0 : i32
    %c0_i32_0 = arith.constant 0 : i32
    %c0_i32_1 = arith.constant 0 : i32
    return %c0_i32, %c0_i32_0 : i32, i32
  }
  func.func @transform_2(%arg0: i32) -> (i32, i32) {
    %c0_i32 = arith.constant 0 : i32
    %c0_i32_0 = arith.constant 0 : i32
    %c0_i32_1 = arith.constant 0 : i32
    return %c0_i32, %c0_i32_0 : i32, i32
  }
  func.func @transform_3(%arg0: i32) -> (i32, i32) {
    %c0_i32 = arith.constant 0 : i32
    %c0_i32_0 = arith.constant 0 : i32
    %c0_i32_1 = arith.constant 0 : i32
    return %c0_i32, %c0_i32_0 : i32, i32
  }
  func.func @transform_4(%arg0: i32) -> (i32, i32) {
    %c0_i32 = arith.constant 0 : i32
    %c0_i32_0 = arith.constant 0 : i32
    %c0_i32_1 = arith.constant 0 : i32
    return %c0_i32, %c0_i32_0 : i32, i32
  }
  func.func @transform_5(%arg0: i32) -> (i32, i32) {
    %c0_i32 = arith.constant 0 : i32
    %c0_i32_0 = arith.constant 0 : i32
    return %arg0, %c0_i32 : i32, i32
  }
  func.func @transform_6(%arg0: i32) -> (i32, i32) {
    %c0_i32 = arith.constant 0 : i32
    %c0_i32_0 = arith.constant 0 : i32
    %c0_i32_1 = arith.constant 0 : i32
    return %c0_i32, %c0_i32_0 : i32, i32
  }
  func.func @transform_7(%arg0: i32) -> (i32, i32) {
    %c0_i32 = arith.constant 0 : i32
    %c0_i32_0 = arith.constant 0 : i32
    %c0_i32_1 = arith.constant 0 : i32
    return %c0_i32, %c0_i32_0 : i32, i32
  }
  func.func @transform_8(%arg0: i32) -> (i32, i32) {
    %c0_i32 = arith.constant 0 : i32
    %c0_i32_0 = arith.constant 0 : i32
    %c0_i32_1 = arith.constant 0 : i32
    return %c0_i32, %c0_i32_0 : i32, i32
  }
  func.func @transform_9(%arg0: i32) -> (i32, i32) {
    %c0_i32 = arith.constant 0 : i32
    %c0_i32_0 = arith.constant 0 : i32
    %c0_i32_1 = arith.constant 0 : i32
    return %c0_i32, %c0_i32_0 : i32, i32
  }
  func.func @transform_10(%arg0: i32) -> (i32, i32) {
    %c0_i32 = arith.constant 0 : i32
    %c0_i32_0 = arith.constant 0 : i32
    return %arg0, %c0_i32 : i32, i32
  }
  func.func @transform_11(%arg0: i32) -> (i32, i32) {
    %c0_i32 = arith.constant 0 : i32
    %c0_i32_0 = arith.constant 0 : i32
    return %arg0, %c0_i32 : i32, i32
  }
}

</mosaic_0001>

<llo_original>
// kernel: vae_forward.1
$region0: #{vae_forward.1}
  #allocation0 [shape = 'u32[]', space=smem, size = 0x4, offset = 0x4, fixed_abs, tag = 'smem constant byte address 0x4 - core index']
  #allocation1 [shape = 'u32[72,128]{1,0:T(1,128)}', space=vmem, size = 0x9000, scoped, tag = 'internal scratch']
  %s0 = inlined_call_operand.vmem [shape: f32[8,784], index: 0, kind: input, shape index: {}]
  %s1 = inlined_call_operand.vmem [shape: bf16[784,256], index: 1, kind: input, shape index: {}]
  %s2 = inlined_call_operand.vmem [shape: f32[1,256], index: 2, kind: input, shape index: {}]
  %s3 = inlined_call_operand.vmem [shape: bf16[256,32], index: 3, kind: input, shape index: {}]
  %s4 = inlined_call_operand.vmem [shape: f32[1,32], index: 4, kind: input, shape index: {}]
  %s5 = inlined_call_operand.vmem [shape: f32[8,16], index: 5, kind: input, shape index: {}]
  %s6 = inlined_call_operand.vmem [shape: bf16[16,256], index: 6, kind: input, shape index: {}]
  %s7 = inlined_call_operand.vmem [shape: f32[1,256], index: 7, kind: input, shape index: {}]
  %s8 = inlined_call_operand.vmem [shape: bf16[256,784], index: 8, kind: input, shape index: {}]
  %s9 = inlined_call_operand.vmem [shape: f32[1,784], index: 9, kind: input, shape index: {}]
  %s10 = inlined_call_operand.hbm [shape: bf16[8,784], index: 10, kind: output, shape index: {0}]
  %s11 = inlined_call_operand.vmem [shape: f32[8,32], index: 11, kind: output, shape index: {1}]
  %12 = xla_tuple %s10, %s11
  %s13 = sld [smem:[#allocation0]]
  $region58: #{vae_forward.1} parent=0
    _
  %s15 = ssub.s32 1, %s13
  %s16 = scalar_select 0, %s15, %s13
  $region1: #{vae_forward.1} parent=0
    #allocation2 [shape = 'u8[14336]{0}', space=vmem, size = 0x3800, scoped, tag = 'output window, operand 0, single buffered']
    #allocation3 [shape = 's32[1]{0}', space=sflag, size = 0x4, scoped, tag = 'scoped memory for vae_forward.1']
    %17 = vsyncpa [#allocation3], 0
    // Predicated region
    $region2: #{vae_forward.1} parent=1 // pred_check
      _
    $region3: #{vae_forward.1} parent=1 // pred_check_branch
      %19 = sbr.rel (0) target = $region5
    $region4: #{vae_forward.1} parent=1 // pred_region
      _
    $region5: #{vae_forward.1} parent=1 // pred_fallthru
      _
    // Predicated region
    $region6: #{vae_forward.1} parent=1 // pred_check
      _
    $region7: #{vae_forward.1} parent=1 // pred_check_branch
      %21 = sbr.rel (0) target = $region9
    $region8: #{vae_forward.1} parent=1 // pred_region
      _
    $region9: #{vae_forward.1} parent=1 // pred_fallthru
      _
    // Predicated region
    $region10: #{vae_forward.1} parent=1 // pred_check
      _
    $region11: #{vae_forward.1} parent=1 // pred_check_branch
      %23 = sbr.rel (0) target = $region13
    $region12: #{vae_forward.1} parent=1 // pred_region
      _
    $region13: #{vae_forward.1} parent=1 // pred_fallthru
      _
    // Predicated region
    $region14: #{vae_forward.1} parent=1 // pred_check
      _
    $region15: #{vae_forward.1} parent=1 // pred_check_branch
      %25 = sbr.rel (0) target = $region17
    $region16: #{vae_forward.1} parent=1 // pred_region
      _
    $region17: #{vae_forward.1} parent=1 // pred_fallthru
      _
    // Predicated region
    $region18: #{vae_forward.1} parent=1 // pred_check
      _
    $region19: #{vae_forward.1} parent=1 // pred_check_branch
      %27 = sbr.rel (0) target = $region21
    $region20: #{vae_forward.1} parent=1 // pred_region
      _
    $region21: #{vae_forward.1} parent=1 // pred_fallthru
      _
    // Predicated region
    $region22: #{vae_forward.1} parent=1 // pred_check
      _
    $region23: #{vae_forward.1} parent=1 // pred_check_branch
      %29 = sbr.rel (0) target = $region25
    $region24: #{vae_forward.1} parent=1 // pred_region
      _
    $region25: #{vae_forward.1} parent=1 // pred_fallthru
      _
    // Predicated region
    $region26: #{vae_forward.1} parent=1 // pred_check
      _
    $region27: #{vae_forward.1} parent=1 // pred_check_branch
      %31 = sbr.rel (0) target = $region29
    $region28: #{vae_forward.1} parent=1 // pred_region
      _
    $region29: #{vae_forward.1} parent=1 // pred_fallthru
      _
    // Predicated region
    $region30: #{vae_forward.1} parent=1 // pred_check
      _
    $region31: #{vae_forward.1} parent=1 // pred_check_branch
      %33 = sbr.rel (0) target = $region33
    $region32: #{vae_forward.1} parent=1 // pred_region
      _
    $region33: #{vae_forward.1} parent=1 // pred_fallthru
      _
    // Predicated region
    $region34: #{vae_forward.1} parent=1 // pred_check
      _
    $region35: #{vae_forward.1} parent=1 // pred_check_branch
      %35 = sbr.rel (0) target = $region37
    $region36: #{vae_forward.1} parent=1 // pred_region
      _
    $region37: #{vae_forward.1} parent=1 // pred_fallthru
      _
    // Predicated region
    $region38: #{vae_forward.1} parent=1 // pred_check
      _
    $region39: #{vae_forward.1} parent=1 // pred_check_branch
      %37 = sbr.rel (0) target = $region41
    $region40: #{vae_forward.1} parent=1 // pred_region
      _
    $region41: #{vae_forward.1} parent=1 // pred_fallthru
      _
    %v39 = vld [vmem:[%s0] sm:$0xff]
    %v40 = vld [vmem:[%s0 + $0x8] sm:$0xff]
    %v41 = vld [vmem:[%s0 + $0x10] sm:$0xff]
    %v42 = vld [vmem:[%s0 + $0x18] sm:$0xff]
    %v43 = vld [vmem:[%s0 + $0x20] sm:$0xff]
    %v44 = vld [vmem:[%s0 + $0x28] sm:$0xff]
    %v45 = vld [vmem:[%s0 + $0x30] sm:$0xff]
    %v46 = vpack.c.bf16 %v39, %v39
    %v47 = vpack.c.bf16 %v40, %v40
    %v48 = vpack.c.bf16 %v41, %v41
    %v49 = vpack.c.bf16 %v42, %v42
    %v50 = vpack.c.bf16 %v43, %v43
    %v51 = vpack.c.bf16 %v44, %v44
    %v52 = vpack.c.bf16 %v45, %v45
    %v53 = vld [vmem:[%s1] sm:$0xff]
    %v54 = vld [vmem:[%s1 + $0x8] sm:$0xff]
    %v55 = vld [vmem:[%s1 + $0x10] sm:$0xff]
    %v56 = vld [vmem:[%s1 + $0x18] sm:$0xff]
    %v57 = vld [vmem:[%s1 + $0x20] sm:$0xff]
    %v58 = vld [vmem:[%s1 + $0x28] sm:$0xff]
    %v59 = vld [vmem:[%s1 + $0x30] sm:$0xff]
    %v60 = vld [vmem:[%s1 + $0x38] sm:$0xff]
    %v61 = vld [vmem:[%s1 + $0x40] sm:$0xff]
    %v62 = vld [vmem:[%s1 + $0x48] sm:$0xff]
    %v63 = vld [vmem:[%s1 + $0x50] sm:$0xff]
    %v64 = vld [vmem:[%s1 + $0x58] sm:$0xff]
    %v65 = vld [vmem:[%s1 + $0x60] sm:$0xff]
    %v66 = vld [vmem:[%s1 + $0x68] sm:$0xff]
    %v67 = vld [vmem:[%s1 + $0x70] sm:$0xff]
    %v68 = vld [vmem:[%s1 + $0x78] sm:$0xff]
    %v69 = vld [vmem:[%s1 + $0x80] sm:$0xff]
    %v70 = vld [vmem:[%s1 + $0x88] sm:$0xff]
    %v71 = vld [vmem:[%s1 + $0x90] sm:$0xff]
    %v72 = vld [vmem:[%s1 + $0x98] sm:$0xff]
    %v73 = vld [vmem:[%s1 + $0xa0] sm:$0xff]
    %v74 = vld [vmem:[%s1 + $0xa8] sm:$0xff]
    %v75 = vld [vmem:[%s1 + $0xb0] sm:$0xff]
    %v76 = vld [vmem:[%s1 + $0xb8] sm:$0xff]
    %v77 = vld [vmem:[%s1 + $0xc0] sm:$0xff]
    %v78 = vld [vmem:[%s1 + $0xc8] sm:$0xff]
    %v79 = vld [vmem:[%s1 + $0xd0] sm:$0xff]
    %v80 = vld [vmem:[%s1 + $0xd8] sm:$0xff]
    %v81 = vld [vmem:[%s1 + $0xe0] sm:$0xff]
    %v82 = vld [vmem:[%s1 + $0xe8] sm:$0xff]
    %v83 = vld [vmem:[%s1 + $0xf0] sm:$0xff]
    %v84 = vld [vmem:[%s1 + $0xf8] sm:$0xff]
    %v85 = vld [vmem:[%s1 + $0x100] sm:$0xff]
    %v86 = vld [vmem:[%s1 + $0x108] sm:$0xff]
    %v87 = vld [vmem:[%s1 + $0x110] sm:$0xff]
    %v88 = vld [vmem:[%s1 + $0x118] sm:$0xff]
    %v89 = vld [vmem:[%s1 + $0x120] sm:$0xff]
    %v90 = vld [vmem:[%s1 + $0x128] sm:$0xff]
    %v91 = vld [vmem:[%s1 + $0x130] sm:$0xff]
    %v92 = vld [vmem:[%s1 + $0x138] sm:$0xff]
    %v93 = vld [vmem:[%s1 + $0x140] sm:$0xff]
    %v94 = vld [vmem:[%s1 + $0x148] sm:$0xff]
    %v95 = vld [vmem:[%s1 + $0x150] sm:$0xff]
    %v96 = vld [vmem:[%s1 + $0x158] sm:$0xff]
    %v97 = vld [vmem:[%s1 + $0x160] sm:$0xff]
    %v98 = vld [vmem:[%s1 + $0x168] sm:$0xff]
    %v99 = vld [vmem:[%s1 + $0x170] sm:$0xff]
    %v100 = vld [vmem:[%s1 + $0x178] sm:$0xff]
    %v101 = vld [vmem:[%s1 + $0x180] sm:$0xff]
    %v102 = vld [vmem:[%s1 + $0x188] sm:$0xff]
    %v103 = vld [vmem:[%s1 + $0x190] sm:$0xff]
    %v104 = vld [vmem:[%s1 + $0x198] sm:$0xff]
    %v105 = vld [vmem:[%s1 + $0x1a0] sm:$0xff]
    %v106 = vld [vmem:[%s1 + $0x1a8] sm:$0xff]
    %v107 = vld [vmem:[%s1 + $0x1b0] sm:$0xff]
    %v108 = vld [vmem:[%s1 + $0x1b8] sm:$0xff]
    %v109 = vld [vmem:[%s1 + $0x1c0] sm:$0xff]
    %v110 = vld [vmem:[%s1 + $0x1c8] sm:$0xff]
    %v111 = vld [vmem:[%s1 + $0x1d0] sm:$0xff]
    %v112 = vld [vmem:[%s1 + $0x1d8] sm:$0xff]
    %v113 = vld [vmem:[%s1 + $0x1e0] sm:$0xff]
    %v114 = vld [vmem:[%s1 + $0x1e8] sm:$0xff]
    %v115 = vld [vmem:[%s1 + $0x1f0] sm:$0xff]
    %v116 = vld [vmem:[%s1 + $0x1f8] sm:$0xff]
    %v117 = vld [vmem:[%s1 + $0x200] sm:$0xff]
    %v118 = vld [vmem:[%s1 + $0x208] sm:$0xff]
    %v119 = vld [vmem:[%s1 + $0x210] sm:$0xff]
    %v120 = vld [vmem:[%s1 + $0x218] sm:$0xff]
    %v121 = vld [vmem:[%s1 + $0x220] sm:$0xff]
    %v122 = vld [vmem:[%s1 + $0x228] sm:$0xff]
    %v123 = vld [vmem:[%s1 + $0x230] sm:$0xff]
    %v124 = vld [vmem:[%s1 + $0x238] sm:$0xff]
    %v125 = vld [vmem:[%s1 + $0x240] sm:$0xff]
    %v126 = vld [vmem:[%s1 + $0x248] sm:$0xff]
    %v127 = vld [vmem:[%s1 + $0x250] sm:$0xff]
    %v128 = vld [vmem:[%s1 + $0x258] sm:$0xff]
    %v129 = vld [vmem:[%s1 + $0x260] sm:$0xff]
    %v130 = vld [vmem:[%s1 + $0x268] sm:$0xff]
    %v131 = vld [vmem:[%s1 + $0x270] sm:$0xff]
    %v132 = vld [vmem:[%s1 + $0x278] sm:$0xff]
    %v133 = vld [vmem:[%s1 + $0x280] sm:$0xff]
    %v134 = vld [vmem:[%s1 + $0x288] sm:$0xff]
    %v135 = vld [vmem:[%s1 + $0x290] sm:$0xff]
    %v136 = vld [vmem:[%s1 + $0x298] sm:$0xff]
    %v137 = vld [vmem:[%s1 + $0x2a0] sm:$0xff]
    %v138 = vld [vmem:[%s1 + $0x2a8] sm:$0xff]
    %v139 = vld [vmem:[%s1 + $0x2b0] sm:$0xff]
    %v140 = vld [vmem:[%s1 + $0x2b8] sm:$0xff]
    %v141 = vld [vmem:[%s1 + $0x2c0] sm:$0xff]
    %v142 = vld [vmem:[%s1 + $0x2c8] sm:$0xff]
    %v143 = vld [vmem:[%s1 + $0x2d0] sm:$0xff]
    %v144 = vld [vmem:[%s1 + $0x2d8] sm:$0xff]
    %v145 = vld [vmem:[%s1 + $0x2e0] sm:$0xff]
    %v146 = vld [vmem:[%s1 + $0x2e8] sm:$0xff]
    %v147 = vld [vmem:[%s1 + $0x2f0] sm:$0xff]
    %v148 = vld [vmem:[%s1 + $0x2f8] sm:$0xff]
    %v149 = vld [vmem:[%s1 + $0x300] sm:$0xff]
    %v150 = vld [vmem:[%s1 + $0x308] sm:$0xff]
    %v151 = vld [vmem:[%s2] sm:$0x3]
    %v153 = vperm.slane %v151, 0
    %v154 = vperm.slane %v151, 1
    %v255 = vunpack.c.l.b16 %v53
    %v256 = vunpack.c.h.b16 %v53
    %v257 = vunpack.c.l.b16 %v54
    %v258 = vunpack.c.h.b16 %v54
    %v259 = vunpack.c.l.b16 %v55
    %v260 = vunpack.c.h.b16 %v55
    %v261 = vunpack.c.l.b16 %v56
    %v262 = vunpack.c.h.b16 %v56
    %v263 = vunpack.c.l.b16 %v57
    %v264 = vunpack.c.h.b16 %v57
    %v265 = vunpack.c.l.b16 %v58
    %v266 = vunpack.c.h.b16 %v58
    %v267 = vunpack.c.l.b16 %v59
    %v268 = vunpack.c.h.b16 %v59
    %v269 = vunpack.c.l.b16 %v60
    %v270 = vunpack.c.h.b16 %v60
    %v271 = vunpack.c.l.b16 %v61
    %v272 = vunpack.c.h.b16 %v61
    %v273 = vunpack.c.l.b16 %v62
    %v274 = vunpack.c.h.b16 %v62
    %v275 = vunpack.c.l.b16 %v63
    %v276 = vunpack.c.h.b16 %v63
    %v277 = vunpack.c.l.b16 %v64
    %v278 = vunpack.c.h.b16 %v64
    %v279 = vunpack.c.l.b16 %v65
    %v280 = vunpack.c.h.b16 %v65
    %v281 = vunpack.c.l.b16 %v66
    %v282 = vunpack.c.h.b16 %v66
    %v283 = vunpack.c.l.b16 %v67
    %v284 = vunpack.c.h.b16 %v67
    %v285 = vunpack.c.l.b16 %v68
    %v286 = vunpack.c.h.b16 %v68
    %v287 = vunpack.c.l.b16 %v69
    %v288 = vunpack.c.h.b16 %v69
    %v289 = vunpack.c.l.b16 %v70
    %v290 = vunpack.c.h.b16 %v70
    %v291 = vunpack.c.l.b16 %v71
    %v292 = vunpack.c.h.b16 %v71
    %v293 = vunpack.c.l.b16 %v72
    %v294 = vunpack.c.h.b16 %v72
    %v295 = vunpack.c.l.b16 %v73
    %v296 = vunpack.c.h.b16 %v73
    %v297 = vunpack.c.l.b16 %v74
    %v298 = vunpack.c.h.b16 %v74
    %v299 = vunpack.c.l.b16 %v75
    %v300 = vunpack.c.h.b16 %v75
    %v301 = vunpack.c.l.b16 %v76
    %v302 = vunpack.c.h.b16 %v76
    %v303 = vunpack.c.l.b16 %v77
    %v304 = vunpack.c.h.b16 %v77
    %v305 = vunpack.c.l.b16 %v78
    %v306 = vunpack.c.h.b16 %v78
    %v307 = vunpack.c.l.b16 %v79
    %v308 = vunpack.c.h.b16 %v79
    %v309 = vunpack.c.l.b16 %v80
    %v310 = vunpack.c.h.b16 %v80
    %v311 = vunpack.c.l.b16 %v81
    %v312 = vunpack.c.h.b16 %v81
    %v313 = vunpack.c.l.b16 %v82
    %v314 = vunpack.c.h.b16 %v82
    %v315 = vunpack.c.l.b16 %v83
    %v316 = vunpack.c.h.b16 %v83
    %v317 = vunpack.c.l.b16 %v84
    %v318 = vunpack.c.h.b16 %v84
    %v319 = vunpack.c.l.b16 %v85
    %v320 = vunpack.c.h.b16 %v85
    %v321 = vunpack.c.l.b16 %v86
    %v322 = vunpack.c.h.b16 %v86
    %v323 = vunpack.c.l.b16 %v87
    %v324 = vunpack.c.h.b16 %v87
    %v325 = vunpack.c.l.b16 %v88
    %v326 = vunpack.c.h.b16 %v88
    %v327 = vunpack.c.l.b16 %v89
    %v328 = vunpack.c.h.b16 %v89
    %v329 = vunpack.c.l.b16 %v90
    %v330 = vunpack.c.h.b16 %v90
    %v331 = vunpack.c.l.b16 %v91
    %v332 = vunpack.c.h.b16 %v91
    %v333 = vunpack.c.l.b16 %v92
    %v334 = vunpack.c.h.b16 %v92
    %v335 = vunpack.c.l.b16 %v93
    %v336 = vunpack.c.h.b16 %v93
    %v337 = vunpack.c.l.b16 %v94
    %v338 = vunpack.c.h.b16 %v94
    %v339 = vunpack.c.l.b16 %v95
    %v340 = vunpack.c.h.b16 %v95
    %v341 = vunpack.c.l.b16 %v96
    %v342 = vunpack.c.h.b16 %v96
    %v343 = vunpack.c.l.b16 %v97
    %v344 = vunpack.c.h.b16 %v97
    %v345 = vunpack.c.l.b16 %v98
    %v346 = vunpack.c.h.b16 %v98
    %v347 = vunpack.c.l.b16 %v99
    %v348 = vunpack.c.h.b16 %v99
    %v349 = vunpack.c.l.b16 %v100
    %v350 = vunpack.c.h.b16 %v100
    %v351 = vunpack.c.l.b16 %v101
    %v352 = vunpack.c.h.b16 %v101
    %v353 = vunpack.c.l.b16 %v102
    %v354 = vunpack.c.h.b16 %v102
    %v355 = vunpack.c.l.b16 %v103
    %v356 = vunpack.c.h.b16 %v103
    %v357 = vunpack.c.l.b16 %v104
    %v358 = vunpack.c.h.b16 %v104
    %v359 = vunpack.c.l.b16 %v105
    %v360 = vunpack.c.h.b16 %v105
    %v361 = vunpack.c.l.b16 %v106
    %v362 = vunpack.c.h.b16 %v106
    %v363 = vunpack.c.l.b16 %v107
    %v364 = vunpack.c.h.b16 %v107
    %v365 = vunpack.c.l.b16 %v108
    %v366 = vunpack.c.h.b16 %v108
    %v367 = vunpack.c.l.b16 %v109
    %v368 = vunpack.c.h.b16 %v109
    %v369 = vunpack.c.l.b16 %v110
    %v370 = vunpack.c.h.b16 %v110
    %v371 = vunpack.c.l.b16 %v111
    %v372 = vunpack.c.h.b16 %v111
    %v373 = vunpack.c.l.b16 %v112
    %v374 = vunpack.c.h.b16 %v112
    %v375 = vunpack.c.l.b16 %v113
    %v376 = vunpack.c.h.b16 %v113
    %v377 = vunpack.c.l.b16 %v114
    %v378 = vunpack.c.h.b16 %v114
    %v379 = vunpack.c.l.b16 %v115
    %v380 = vunpack.c.h.b16 %v115
    %v381 = vunpack.c.l.b16 %v116
    %v382 = vunpack.c.h.b16 %v116
    %v383 = vunpack.c.l.b16 %v117
    %v384 = vunpack.c.h.b16 %v117
    %v385 = vunpack.c.l.b16 %v118
    %v386 = vunpack.c.h.b16 %v118
    %v387 = vunpack.c.l.b16 %v119
    %v388 = vunpack.c.h.b16 %v119
    %v389 = vunpack.c.l.b16 %v120
    %v390 = vunpack.c.h.b16 %v120
    %v391 = vunpack.c.l.b16 %v121
    %v392 = vunpack.c.h.b16 %v121
    %v393 = vunpack.c.l.b16 %v122
    %v394 = vunpack.c.h.b16 %v122
    %v395 = vunpack.c.l.b16 %v123
    %v396 = vunpack.c.h.b16 %v123
    %v397 = vunpack.c.l.b16 %v124
    %v398 = vunpack.c.h.b16 %v124
    %v399 = vunpack.c.l.b16 %v125
    %v400 = vunpack.c.h.b16 %v125
    %v401 = vunpack.c.l.b16 %v126
    %v402 = vunpack.c.h.b16 %v126
    %v403 = vunpack.c.l.b16 %v127
    %v404 = vunpack.c.h.b16 %v127
    %v405 = vunpack.c.l.b16 %v128
    %v406 = vunpack.c.h.b16 %v128
    %v407 = vunpack.c.l.b16 %v129
    %v408 = vunpack.c.h.b16 %v129
    %v409 = vunpack.c.l.b16 %v130
    %v410 = vunpack.c.h.b16 %v130
    %v411 = vunpack.c.l.b16 %v131
    %v412 = vunpack.c.h.b16 %v131
    %v413 = vunpack.c.l.b16 %v132
    %v414 = vunpack.c.h.b16 %v132
    %v415 = vunpack.c.l.b16 %v133
    %v416 = vunpack.c.h.b16 %v133
    %v417 = vunpack.c.l.b16 %v134
    %v418 = vunpack.c.h.b16 %v134
    %v419 = vunpack.c.l.b16 %v135
    %v420 = vunpack.c.h.b16 %v135
    %v421 = vunpack.c.l.b16 %v136
    %v422 = vunpack.c.h.b16 %v136
    %v423 = vunpack.c.l.b16 %v137
    %v424 = vunpack.c.h.b16 %v137
    %v425 = vunpack.c.l.b16 %v138
    %v426 = vunpack.c.h.b16 %v138
    %v427 = vunpack.c.l.b16 %v139
    %v428 = vunpack.c.h.b16 %v139
    %v429 = vunpack.c.l.b16 %v140
    %v430 = vunpack.c.h.b16 %v140
    %v431 = vunpack.c.l.b16 %v141
    %v432 = vunpack.c.h.b16 %v141
    %v433 = vunpack.c.l.b16 %v142
    %v434 = vunpack.c.h.b16 %v142
    %v435 = vunpack.c.l.b16 %v143
    %v436 = vunpack.c.h.b16 %v143
    %v437 = vunpack.c.l.b16 %v144
    %v438 = vunpack.c.h.b16 %v144
    %v439 = vunpack.c.l.b16 %v145
    %v440 = vunpack.c.h.b16 %v145
    %v441 = vunpack.c.l.b16 %v146
    %v442 = vunpack.c.h.b16 %v146
    %v443 = vunpack.c.l.b16 %v147
    %v444 = vunpack.c.h.b16 %v147
    %v445 = vunpack.c.l.b16 %v148
    %v446 = vunpack.c.h.b16 %v148
    %v447 = vunpack.c.l.b16 %v149
    %v448 = vunpack.c.h.b16 %v149
    %v449 = vunpack.c.l.b16 %v150
    %v450 = vunpack.c.h.b16 %v150
    %v451 = vpack.c.b16 %v257, %v255
    %v452 = vpack.c.b16 %v258, %v256
    %v453 = vpack.c.b16 %v261, %v259
    %v454 = vpack.c.b16 %v262, %v260
    %v455 = vpack.c.b16 %v265, %v263
    %v456 = vpack.c.b16 %v266, %v264
    %v457 = vpack.c.b16 %v269, %v267
    %v458 = vpack.c.b16 %v270, %v268
    %v459 = vpack.c.b16 %v273, %v271
    %v460 = vpack.c.b16 %v274, %v272
    %v461 = vpack.c.b16 %v277, %v275
    %v462 = vpack.c.b16 %v278, %v276
    %v463 = vpack.c.b16 %v281, %v279
    %v464 = vpack.c.b16 %v282, %v280
    %v465 = vpack.c.b16 %v285, %v283
    %v466 = vpack.c.b16 %v286, %v284
    %v467 = vpack.c.b16 %v289, %v287
    %v468 = vpack.c.b16 %v290, %v288
    %v469 = vpack.c.b16 %v293, %v291
    %v470 = vpack.c.b16 %v294, %v292
    %v471 = vpack.c.b16 %v297, %v295
    %v472 = vpack.c.b16 %v298, %v296
    %v473 = vpack.c.b16 %v301, %v299
    %v474 = vpack.c.b16 %v302, %v300
    %v475 = vpack.c.b16 %v305, %v303
    %v476 = vpack.c.b16 %v306, %v304
    %v477 = vpack.c.b16 %v309, %v307
    %v478 = vpack.c.b16 %v310, %v308
    %v479 = vpack.c.b16 %v313, %v311
    %v480 = vpack.c.b16 %v314, %v312
    %v481 = vpack.c.b16 %v317, %v315
    %v482 = vpack.c.b16 %v318, %v316
    %v483 = vpack.c.b16 %v321, %v319
    %v484 = vpack.c.b16 %v322, %v320
    %v485 = vpack.c.b16 %v325, %v323
    %v486 = vpack.c.b16 %v326, %v324
    %v487 = vpack.c.b16 %v329, %v327
    %v488 = vpack.c.b16 %v330, %v328
    %v489 = vpack.c.b16 %v333, %v331
    %v490 = vpack.c.b16 %v334, %v332
    %v491 = vpack.c.b16 %v337, %v335
    %v492 = vpack.c.b16 %v338, %v336
    %v493 = vpack.c.b16 %v341, %v339
    %v494 = vpack.c.b16 %v342, %v340
    %v495 = vpack.c.b16 %v345, %v343
    %v496 = vpack.c.b16 %v346, %v344
    %v497 = vpack.c.b16 %v349, %v347
    %v498 = vpack.c.b16 %v350, %v348
    %v499 = vpack.c.b16 %v353, %v351
    %v500 = vpack.c.b16 %v354, %v352
    %v501 = vpack.c.b16 %v357, %v355
    %v502 = vpack.c.b16 %v358, %v356
    %v503 = vpack.c.b16 %v361, %v359
    %v504 = vpack.c.b16 %v362, %v360
    %v505 = vpack.c.b16 %v365, %v363
    %v506 = vpack.c.b16 %v366, %v364
    %v507 = vpack.c.b16 %v369, %v367
    %v508 = vpack.c.b16 %v370, %v368
    %v509 = vpack.c.b16 %v373, %v371
    %v510 = vpack.c.b16 %v374, %v372
    %v511 = vpack.c.b16 %v377, %v375
    %v512 = vpack.c.b16 %v378, %v376
    %v513 = vpack.c.b16 %v381, %v379
    %v514 = vpack.c.b16 %v382, %v380
    %v515 = vpack.c.b16 %v385, %v383
    %v516 = vpack.c.b16 %v386, %v384
    %v517 = vpack.c.b16 %v389, %v387
    %v518 = vpack.c.b16 %v390, %v388
    %v519 = vpack.c.b16 %v393, %v391
    %v520 = vpack.c.b16 %v394, %v392
    %v521 = vpack.c.b16 %v397, %v395
    %v522 = vpack.c.b16 %v398, %v396
    %v523 = vpack.c.b16 %v401, %v399
    %v524 = vpack.c.b16 %v402, %v400
    %v525 = vpack.c.b16 %v405, %v403
    %v526 = vpack.c.b16 %v406, %v404
    %v527 = vpack.c.b16 %v409, %v407
    %v528 = vpack.c.b16 %v410, %v408
    %v529 = vpack.c.b16 %v413, %v411
    %v530 = vpack.c.b16 %v414, %v412
    %v531 = vpack.c.b16 %v417, %v415
    %v532 = vpack.c.b16 %v418, %v416
    %v533 = vpack.c.b16 %v421, %v419
    %v534 = vpack.c.b16 %v422, %v420
    %v535 = vpack.c.b16 %v425, %v423
    %v536 = vpack.c.b16 %v426, %v424
    %v537 = vpack.c.b16 %v429, %v427
    %v538 = vpack.c.b16 %v430, %v428
    %v539 = vpack.c.b16 %v433, %v431
    %v540 = vpack.c.b16 %v434, %v432
    %v541 = vpack.c.b16 %v437, %v435
    %v542 = vpack.c.b16 %v438, %v436
    %v543 = vpack.c.b16 %v441, %v439
    %v544 = vpack.c.b16 %v442, %v440
    %v545 = vpack.c.b16 %v445, %v443
    %v546 = vpack.c.b16 %v446, %v444
    %v547 = vpack.c.b16 %v449, %v447
    %v548 = vpack.c.b16 %v450, %v448
    %vm647 = vcmask 130048
    %v649 = vsel %vm647, %v52, 0
    %651 = vmatpush.bf16.msra.mxu0 %v465
    %652 = vmatpush.bf16.msra.mxu0 %v463
    %653 = vmatpush.bf16.msra.mxu0 %v461
    %654 = vmatpush.bf16.msra.mxu0 %v459
    %655 = vmatpush.bf16.msra.mxu0 %v457
    %656 = vmatpush.bf16.msra.mxu0 %v455
    %657 = vmatpush.bf16.msra.mxu0 %v453
    %658 = vmatpush.bf16.msra.mxu0 %v451
    %659 = vmatmul.bf16.gmra.mxu0 %v46
    %v660 = vpop.f32.mrf.mxu0
    %v661 = vadd.f32 %v153, %v660
    %v662 = vpop.f32.mrf.mxu0
    %663 = vdwg.mxu0
    %664 = vmatpush.bf16.msra.mxu0 %v481
    %665 = vmatpush.bf16.msra.mxu0 %v479
    %666 = vmatpush.bf16.msra.mxu0 %v477
    %667 = vmatpush.bf16.msra.mxu0 %v475
    %668 = vmatpush.bf16.msra.mxu0 %v473
    %669 = vmatpush.bf16.msra.mxu0 %v471
    %670 = vmatpush.bf16.msra.mxu0 %v469
    %671 = vmatpush.bf16.msra.mxu0 %v467
    %672 = vmatmul.bf16.gmra.mxu0 %v47
    %v673 = vpop.f32.mrf.mxu0
    %v674 = vadd.f32 %v661, %v673
    %v675 = vpop.f32.mrf.mxu0
    %676 = vdwg.mxu0
    %677 = vmatpush.bf16.msra.mxu0 %v497
    %678 = vmatpush.bf16.msra.mxu0 %v495
    %679 = vmatpush.bf16.msra.mxu0 %v493
    %680 = vmatpush.bf16.msra.mxu0 %v491
    %681 = vmatpush.bf16.msra.mxu0 %v489
    %682 = vmatpush.bf16.msra.mxu0 %v487
    %683 = vmatpush.bf16.msra.mxu0 %v485
    %684 = vmatpush.bf16.msra.mxu0 %v483
    %685 = vmatmul.bf16.gmra.mxu0 %v48
    %v686 = vpop.f32.mrf.mxu0
    %v687 = vadd.f32 %v674, %v686
    %v688 = vpop.f32.mrf.mxu0
    %689 = vdwg.mxu0
    %690 = vmatpush.bf16.msra.mxu0 %v513
    %691 = vmatpush.bf16.msra.mxu0 %v511
    %692 = vmatpush.bf16.msra.mxu0 %v509
    %693 = vmatpush.bf16.msra.mxu0 %v507
    %694 = vmatpush.bf16.msra.mxu0 %v505
    %695 = vmatpush.bf16.msra.mxu0 %v503
    %696 = vmatpush.bf16.msra.mxu0 %v501
    %697 = vmatpush.bf16.msra.mxu0 %v499
    %698 = vmatmul.bf16.gmra.mxu0 %v49
    %v699 = vpop.f32.mrf.mxu0
    %v700 = vadd.f32 %v687, %v699
    %v701 = vpop.f32.mrf.mxu0
    %702 = vdwg.mxu0
    %703 = vmatpush.bf16.msra.mxu0 %v529
    %704 = vmatpush.bf16.msra.mxu0 %v527
    %705 = vmatpush.bf16.msra.mxu0 %v525
    %706 = vmatpush.bf16.msra.mxu0 %v523
    %707 = vmatpush.bf16.msra.mxu0 %v521
    %708 = vmatpush.bf16.msra.mxu0 %v519
    %709 = vmatpush.bf16.msra.mxu0 %v517
    %710 = vmatpush.bf16.msra.mxu0 %v515
    %711 = vmatmul.bf16.gmra.mxu0 %v50
    %v712 = vpop.f32.mrf.mxu0
    %v713 = vadd.f32 %v700, %v712
    %v714 = vpop.f32.mrf.mxu0
    %715 = vdwg.mxu0
    %716 = vmatpush.bf16.msra.mxu0 %v545
    %717 = vmatpush.bf16.msra.mxu0 %v543
    %718 = vmatpush.bf16.msra.mxu0 %v541
    %719 = vmatpush.bf16.msra.mxu0 %v539
    %720 = vmatpush.bf16.msra.mxu0 %v537
    %721 = vmatpush.bf16.msra.mxu0 %v535
    %722 = vmatpush.bf16.msra.mxu0 %v533
    %723 = vmatpush.bf16.msra.mxu0 %v531
    %724 = vmatmul.bf16.gmra.mxu0 %v51
    %v725 = vpop.f32.mrf.mxu0
    %v726 = vadd.f32 %v713, %v725
    %v727 = vpop.f32.mrf.mxu0
    %728 = vdwg.mxu0
    %729 = vmatpush.bf16.msra.mxu0 0
    %730 = vmatpush.bf16.msra.mxu0 0
    %731 = vmatpush.bf16.msra.mxu0 0
    %732 = vmatpush.bf16.msra.mxu0 0
    %733 = vmatpush.bf16.msra.mxu0 0
    %734 = vmatpush.bf16.msra.mxu0 0
    %735 = vmatpush.bf16.msra.mxu0 0
    %736 = vmatpush.bf16.msra.mxu0 %v547
    %737 = vmatmul.bf16.gmra.mxu0 %v649
    %v738 = vpop.f32.mrf.mxu0
    %v739 = vadd.f32 %v726, %v738
    %v740 = vpop.f32.mrf.mxu0
    %741 = vdwg.mxu0
    %742 = vmatpush.bf16.msra.mxu0 %v466
    %743 = vmatpush.bf16.msra.mxu0 %v464
    %744 = vmatpush.bf16.msra.mxu0 %v462
    %745 = vmatpush.bf16.msra.mxu0 %v460
    %746 = vmatpush.bf16.msra.mxu0 %v458
    %747 = vmatpush.bf16.msra.mxu0 %v456
    %748 = vmatpush.bf16.msra.mxu0 %v454
    %749 = vmatpush.bf16.msra.mxu0 %v452
    %750 = vmatmul.bf16.gmra.mxu0 %v46
    %v751 = vpop.f32.mrf.mxu0
    %v752 = vadd.f32 %v154, %v751
    %v753 = vpop.f32.mrf.mxu0
    %754 = vdwg.mxu0
    %755 = vmatpush.bf16.msra.mxu0 %v482
    %756 = vmatpush.bf16.msra.mxu0 %v480
    %757 = vmatpush.bf16.msra.mxu0 %v478
    %758 = vmatpush.bf16.msra.mxu0 %v476
    %759 = vmatpush.bf16.msra.mxu0 %v474
    %760 = vmatpush.bf16.msra.mxu0 %v472
    %761 = vmatpush.bf16.msra.mxu0 %v470
    %762 = vmatpush.bf16.msra.mxu0 %v468
    %763 = vmatmul.bf16.gmra.mxu0 %v47
    %v764 = vpop.f32.mrf.mxu0
    %v765 = vadd.f32 %v752, %v764
    %v766 = vpop.f32.mrf.mxu0
    %767 = vdwg.mxu0
    %768 = vmatpush.bf16.msra.mxu0 %v498
    %769 = vmatpush.bf16.msra.mxu0 %v496
    %770 = vmatpush.bf16.msra.mxu0 %v494
    %771 = vmatpush.bf16.msra.mxu0 %v492
    %772 = vmatpush.bf16.msra.mxu0 %v490
    %773 = vmatpush.bf16.msra.mxu0 %v488
    %774 = vmatpush.bf16.msra.mxu0 %v486
    %775 = vmatpush.bf16.msra.mxu0 %v484
    %776 = vmatmul.bf16.gmra.mxu0 %v48
    %v777 = vpop.f32.mrf.mxu0
    %v778 = vadd.f32 %v765, %v777
    %v779 = vpop.f32.mrf.mxu0
    %780 = vdwg.mxu0
    %781 = vmatpush.bf16.msra.mxu0 %v514
    %782 = vmatpush.bf16.msra.mxu0 %v512
    %783 = vmatpush.bf16.msra.mxu0 %v510
    %784 = vmatpush.bf16.msra.mxu0 %v508
    %785 = vmatpush.bf16.msra.mxu0 %v506
    %786 = vmatpush.bf16.msra.mxu0 %v504
    %787 = vmatpush.bf16.msra.mxu0 %v502
    %788 = vmatpush.bf16.msra.mxu0 %v500
    %789 = vmatmul.bf16.gmra.mxu0 %v49
    %v790 = vpop.f32.mrf.mxu0
    %v791 = vadd.f32 %v778, %v790
    %v792 = vpop.f32.mrf.mxu0
    %793 = vdwg.mxu0
    %794 = vmatpush.bf16.msra.mxu0 %v530
    %795 = vmatpush.bf16.msra.mxu0 %v528
    %796 = vmatpush.bf16.msra.mxu0 %v526
    %797 = vmatpush.bf16.msra.mxu0 %v524
    %798 = vmatpush.bf16.msra.mxu0 %v522
    %799 = vmatpush.bf16.msra.mxu0 %v520
    %800 = vmatpush.bf16.msra.mxu0 %v518
    %801 = vmatpush.bf16.msra.mxu0 %v516
    %802 = vmatmul.bf16.gmra.mxu0 %v50
    %v803 = vpop.f32.mrf.mxu0
    %v804 = vadd.f32 %v791, %v803
    %v805 = vpop.f32.mrf.mxu0
    %806 = vdwg.mxu0
    %807 = vmatpush.bf16.msra.mxu0 %v546
    %808 = vmatpush.bf16.msra.mxu0 %v544
    %809 = vmatpush.bf16.msra.mxu0 %v542
    %810 = vmatpush.bf16.msra.mxu0 %v540
    %811 = vmatpush.bf16.msra.mxu0 %v538
    %812 = vmatpush.bf16.msra.mxu0 %v536
    %813 = vmatpush.bf16.msra.mxu0 %v534
    %814 = vmatpush.bf16.msra.mxu0 %v532
    %815 = vmatmul.bf16.gmra.mxu0 %v51
    %v816 = vpop.f32.mrf.mxu0
    %v817 = vadd.f32 %v804, %v816
    %v818 = vpop.f32.mrf.mxu0
    %819 = vdwg.mxu0
    %820 = vmatpush.bf16.msra.mxu0 0
    %821 = vmatpush.bf16.msra.mxu0 0
    %822 = vmatpush.bf16.msra.mxu0 0
    %823 = vmatpush.bf16.msra.mxu0 0
    %824 = vmatpush.bf16.msra.mxu0 0
    %825 = vmatpush.bf16.msra.mxu0 0
    %826 = vmatpush.bf16.msra.mxu0 0
    %827 = vmatpush.bf16.msra.mxu0 %v548
    %828 = vmatmul.bf16.gmra.mxu0 %v649
    %v829 = vpop.f32.mrf.mxu0
    %v830 = vadd.f32 %v817, %v829
    %v831 = vpop.f32.mrf.mxu0
    %832 = vdwg.mxu0
    %v833 = vmax.f32 %v739, 0.0
    %v834 = vmax.f32 %v830, 0.0
    %v835 = vpack.c.bf16 %v833, %v833
    %v836 = vpack.c.bf16 %v834, %v834
    %v837 = vld [vmem:[%s3] sm:$0xf]
    %v838 = vld [vmem:[%s3 + $0x4] sm:$0xf]
    %v839 = vld [vmem:[%s3 + $0x8] sm:$0xf]
    %v840 = vld [vmem:[%s3 + $0xc] sm:$0xf]
    %v841 = vld [vmem:[%s3 + $0x10] sm:$0xf]
    %v842 = vld [vmem:[%s3 + $0x14] sm:$0xf]
    %v843 = vld [vmem:[%s3 + $0x18] sm:$0xf]
    %v844 = vld [vmem:[%s3 + $0x1c] sm:$0xf]
    %v845 = vld [vmem:[%s3 + $0x20] sm:$0xf]
    %v846 = vld [vmem:[%s3 + $0x24] sm:$0xf]
    %v847 = vld [vmem:[%s3 + $0x28] sm:$0xf]
    %v848 = vld [vmem:[%s3 + $0x2c] sm:$0xf]
    %v849 = vld [vmem:[%s3 + $0x30] sm:$0xf]
    %v850 = vld [vmem:[%s3 + $0x34] sm:$0xf]
    %v851 = vld [vmem:[%s3 + $0x38] sm:$0xf]
    %v852 = vld [vmem:[%s3 + $0x3c] sm:$0xf]
    %v853 = vld [vmem:[%s3 + $0x40] sm:$0xf]
    %v854 = vld [vmem:[%s3 + $0x44] sm:$0xf]
    %v855 = vld [vmem:[%s3 + $0x48] sm:$0xf]
    %v856 = vld [vmem:[%s3 + $0x4c] sm:$0xf]
    %v857 = vld [vmem:[%s3 + $0x50] sm:$0xf]
    %v858 = vld [vmem:[%s3 + $0x54] sm:$0xf]
    %v859 = vld [vmem:[%s3 + $0x58] sm:$0xf]
    %v860 = vld [vmem:[%s3 + $0x5c] sm:$0xf]
    %v861 = vld [vmem:[%s3 + $0x60] sm:$0xf]
    %v862 = vld [vmem:[%s3 + $0x64] sm:$0xf]
    %v863 = vld [vmem:[%s3 + $0x68] sm:$0xf]
    %v864 = vld [vmem:[%s3 + $0x6c] sm:$0xf]
    %v865 = vld [vmem:[%s3 + $0x70] sm:$0xf]
    %v866 = vld [vmem:[%s3 + $0x74] sm:$0xf]
    %v867 = vld [vmem:[%s3 + $0x78] sm:$0xf]
    %v868 = vld [vmem:[%s3 + $0x7c] sm:$0xf]
    %v869 = vld [vmem:[%s4] sm:$0x1]
    %v871 = vperm.slane %v869, 0
    %v905 = vunpack.c.l.b16 %v837
    %v906 = vunpack.c.l.b16 %v838
    %v907 = vunpack.c.l.b16 %v839
    %v908 = vunpack.c.l.b16 %v840
    %v909 = vunpack.c.l.b16 %v841
    %v910 = vunpack.c.l.b16 %v842
    %v911 = vunpack.c.l.b16 %v843
    %v912 = vunpack.c.l.b16 %v844
    %v913 = vunpack.c.l.b16 %v845
    %v914 = vunpack.c.l.b16 %v846
    %v915 = vunpack.c.l.b16 %v847
    %v916 = vunpack.c.l.b16 %v848
    %v917 = vunpack.c.l.b16 %v849
    %v918 = vunpack.c.l.b16 %v850
    %v919 = vunpack.c.l.b16 %v851
    %v920 = vunpack.c.l.b16 %v852
    %v921 = vunpack.c.l.b16 %v853
    %v922 = vunpack.c.l.b16 %v854
    %v923 = vunpack.c.l.b16 %v855
    %v924 = vunpack.c.l.b16 %v856
    %v925 = vunpack.c.l.b16 %v857
    %v926 = vunpack.c.l.b16 %v858
    %v927 = vunpack.c.l.b16 %v859
    %v928 = vunpack.c.l.b16 %v860
    %v929 = vunpack.c.l.b16 %v861
    %v930 = vunpack.c.l.b16 %v862
    %v931 = vunpack.c.l.b16 %v863
    %v932 = vunpack.c.l.b16 %v864
    %v933 = vunpack.c.l.b16 %v865
    %v934 = vunpack.c.l.b16 %v866
    %v935 = vunpack.c.l.b16 %v867
    %v936 = vunpack.c.l.b16 %v868
    %v937 = vpack.c.b16 %v906, %v905
    %v938 = vpack.c.b16 %v908, %v907
    %v939 = vpack.c.b16 %v910, %v909
    %v940 = vpack.c.b16 %v912, %v911
    %v941 = vpack.c.b16 %v914, %v913
    %v942 = vpack.c.b16 %v916, %v915
    %v943 = vpack.c.b16 %v918, %v917
    %v944 = vpack.c.b16 %v920, %v919
    %v945 = vpack.c.b16 %v922, %v921
    %v946 = vpack.c.b16 %v924, %v923
    %v947 = vpack.c.b16 %v926, %v925
    %v948 = vpack.c.b16 %v928, %v927
    %v949 = vpack.c.b16 %v930, %v929
    %v950 = vpack.c.b16 %v932, %v931
    %v951 = vpack.c.b16 %v934, %v933
    %v952 = vpack.c.b16 %v936, %v935
    %969 = vmatpush.bf16.msra.mxu0 %v944
    %970 = vmatpush.bf16.msra.mxu0 %v943
    %971 = vmatpush.bf16.msra.mxu0 %v942
    %972 = vmatpush.bf16.msra.mxu0 %v941
    %973 = vmatpush.bf16.msra.mxu0 %v940
    %974 = vmatpush.bf16.msra.mxu0 %v939
    %975 = vmatpush.bf16.msra.mxu0 %v938
    %976 = vmatpush.bf16.msra.mxu0 %v937
    %977 = vmatmul.bf16.gmra.mxu0 %v835
    %v978 = vpop.f32.mrf.mxu0
    %v979 = vadd.f32 %v871, %v978
    %v980 = vpop.f32.mrf.mxu0
    %981 = vdwg.mxu0
    %982 = vmatpush.bf16.msra.mxu0 %v952
    %983 = vmatpush.bf16.msra.mxu0 %v951
    %984 = vmatpush.bf16.msra.mxu0 %v950
    %985 = vmatpush.bf16.msra.mxu0 %v949
    %986 = vmatpush.bf16.msra.mxu0 %v948
    %987 = vmatpush.bf16.msra.mxu0 %v947
    %988 = vmatpush.bf16.msra.mxu0 %v946
    %989 = vmatpush.bf16.msra.mxu0 %v945
    %990 = vmatmul.bf16.gmra.mxu0 %v836
    %v991 = vpop.f32.mrf.mxu0
    %v992 = vadd.f32 %v979, %v991
    %v993 = vpop.f32.mrf.mxu0
    %994 = vdwg.mxu0
    %v995 = vmul.f32 %v992, 0.5
    %v996 = vmul.f32 %v995, 1.442695
    %v997 = vpow.pop %v996
    %v998 = vld [vmem:[%s5] sm:$0xff]
    %1000 = vrot.lane.b32.xlu0 %v997, 112
    %v1001 = vpop.permute.xlu0 %1000
    %v1003 = vmul.f32 %v998, %v1001
    %v1004 = vadd.f32 %v992, %v1003
    %v1005 = vpack.c.bf16 %v1004, %v1004
    %v1006 = vld [vmem:[%s6] sm:$0xff]
    %v1007 = vld [vmem:[%s6 + $0x8] sm:$0xff]
    %v1008 = vld [vmem:[%s7] sm:$0x3]
    %v1010 = vperm.slane %v1008, 0
    %v1011 = vperm.slane %v1008, 1
    %v1016 = vunpack.c.l.b16 %v1006
    %v1017 = vunpack.c.h.b16 %v1006
    %v1018 = vunpack.c.l.b16 %v1007
    %v1019 = vunpack.c.h.b16 %v1007
    %v1020 = vpack.c.b16 %v1018, %v1016
    %v1021 = vpack.c.b16 %v1019, %v1017
    %v1025 = vsel %vm647, %v1005, 0
    %1027 = vmatpush.bf16.msra.mxu0 0
    %1028 = vmatpush.bf16.msra.mxu0 0
    %1029 = vmatpush.bf16.msra.mxu0 0
    %1030 = vmatpush.bf16.msra.mxu0 0
    %1031 = vmatpush.bf16.msra.mxu0 0
    %1032 = vmatpush.bf16.msra.mxu0 0
    %1033 = vmatpush.bf16.msra.mxu0 0
    %1034 = vmatpush.bf16.msra.mxu0 %v1020
    %1035 = vmatmul.bf16.gmra.mxu0 %v1025
    %v1036 = vpop.f32.mrf.mxu0
    %v1037 = vadd.f32 %v1010, %v1036
    %v1038 = vpop.f32.mrf.mxu0
    %1039 = vdwg.mxu0
    %1040 = vmatpush.bf16.msra.mxu0 0
    %1041 = vmatpush.bf16.msra.mxu0 0
    %1042 = vmatpush.bf16.msra.mxu0 0
    %1043 = vmatpush.bf16.msra.mxu0 0
    %1044 = vmatpush.bf16.msra.mxu0 0
    %1045 = vmatpush.bf16.msra.mxu0 0
    %1046 = vmatpush.bf16.msra.mxu0 0
    %1047 = vmatpush.bf16.msra.mxu0 %v1021
    %1048 = vmatmul.bf16.gmra.mxu0 %v1025
    %v1049 = vpop.f32.mrf.mxu0
    %v1050 = vadd.f32 %v1011, %v1049
    %v1051 = vpop.f32.mrf.mxu0
    %1052 = vdwg.mxu0
    %v1053 = vmax.f32 %v1037, 0.0
    %v1054 = vmax.f32 %v1050, 0.0
    %v1055 = vpack.c.bf16 %v1053, %v1053
    %v1056 = vpack.c.bf16 %v1054, %v1054
    %v1057 = vld [vmem:[%s8] sm:$0xff]
    %v1058 = vld [vmem:[%s8 + $0x8] sm:$0xff]
    %v1059 = vld [vmem:[%s8 + $0x10] sm:$0xff]
    %v1060 = vld [vmem:[%s8 + $0x18] sm:$0xf]
    %v1061 = vld [vmem:[%s8 + $0x1c] sm:$0xff]
    %v1062 = vld [vmem:[%s8 + $0x24] sm:$0xff]
    %v1063 = vld [vmem:[%s8 + $0x2c] sm:$0xff]
    %v1064 = vld [vmem:[%s8 + $0x34] sm:$0xf]
    %v1065 = vld [vmem:[%s8 + $0x38] sm:$0xff]
    %v1066 = vld [vmem:[%s8 + $0x40] sm:$0xff]
    %v1067 = vld [vmem:[%s8 + $0x48] sm:$0xff]
    %v1068 = vld [vmem:[%s8 + $0x50] sm:$0xf]
    %v1069 = vld [vmem:[%s8 + $0x54] sm:$0xff]
    %v1070 = vld [vmem:[%s8 + $0x5c] sm:$0xff]
    %v1071 = vld [vmem:[%s8 + $0x64] sm:$0xff]
    %v1072 = vld [vmem:[%s8 + $0x6c] sm:$0xf]
    %v1073 = vld [vmem:[%s8 + $0x70] sm:$0xff]
    %v1074 = vld [vmem:[%s8 + $0x78] sm:$0xff]
    %v1075 = vld [vmem:[%s8 + $0x80] sm:$0xff]
    %v1076 = vld [vmem:[%s8 + $0x88] sm:$0xf]
    %v1077 = vld [vmem:[%s8 + $0x8c] sm:$0xff]
    %v1078 = vld [vmem:[%s8 + $0x94] sm:$0xff]
    %v1079 = vld [vmem:[%s8 + $0x9c] sm:$0xff]
    %v1080 = vld [vmem:[%s8 + $0xa4] sm:$0xf]
    %v1081 = vld [vmem:[%s8 + $0xa8] sm:$0xff]
    %v1082 = vld [vmem:[%s8 + $0xb0] sm:$0xff]
    %v1083 = vld [vmem:[%s8 + $0xb8] sm:$0xff]
    %v1084 = vld [vmem:[%s8 + $0xc0] sm:$0xf]
    %v1085 = vld [vmem:[%s8 + $0xc4] sm:$0xff]
    %v1086 = vld [vmem:[%s8 + $0xcc] sm:$0xff]
    %v1087 = vld [vmem:[%s8 + $0xd4] sm:$0xff]
    %v1088 = vld [vmem:[%s8 + $0xdc] sm:$0xf]
    %v1089 = vld [vmem:[%s8 + $0xe0] sm:$0xff]
    %v1090 = vld [vmem:[%s8 + $0xe8] sm:$0xff]
    %v1091 = vld [vmem:[%s8 + $0xf0] sm:$0xff]
    %v1092 = vld [vmem:[%s8 + $0xf8] sm:$0xf]
    %v1093 = vld [vmem:[%s8 + $0xfc] sm:$0xff]
    %v1094 = vld [vmem:[%s8 + $0x104] sm:$0xff]
    %v1095 = vld [vmem:[%s8 + $0x10c] sm:$0xff]
    %v1096 = vld [vmem:[%s8 + $0x114] sm:$0xf]
    %v1097 = vld [vmem:[%s8 + $0x118] sm:$0xff]
    %v1098 = vld [vmem:[%s8 + $0x120] sm:$0xff]
    %v1099 = vld [vmem:[%s8 + $0x128] sm:$0xff]
    %v1100 = vld [vmem:[%s8 + $0x130] sm:$0xf]
    %v1101 = vld [vmem:[%s8 + $0x134] sm:$0xff]
    %v1102 = vld [vmem:[%s8 + $0x13c] sm:$0xff]
    %v1103 = vld [vmem:[%s8 + $0x144] sm:$0xff]
    %v1104 = vld [vmem:[%s8 + $0x14c] sm:$0xf]
    %v1105 = vld [vmem:[%s8 + $0x150] sm:$0xff]
    %v1106 = vld [vmem:[%s8 + $0x158] sm:$0xff]
    %v1107 = vld [vmem:[%s8 + $0x160] sm:$0xff]
    %v1108 = vld [vmem:[%s8 + $0x168] sm:$0xf]
    %v1109 = vld [vmem:[%s8 + $0x16c] sm:$0xff]
    %v1110 = vld [vmem:[%s8 + $0x174] sm:$0xff]
    %v1111 = vld [vmem:[%s8 + $0x17c] sm:$0xff]
    %v1112 = vld [vmem:[%s8 + $0x184] sm:$0xf]
    %v1113 = vld [vmem:[%s8 + $0x188] sm:$0xff]
    %v1114 = vld [vmem:[%s8 + $0x190] sm:$0xff]
    %v1115 = vld [vmem:[%s8 + $0x198] sm:$0xff]
    %v1116 = vld [vmem:[%s8 + $0x1a0] sm:$0xf]
    %v1117 = vld [vmem:[%s8 + $0x1a4] sm:$0xff]
    %v1118 = vld [vmem:[%s8 + $0x1ac] sm:$0xff]
    %v1119 = vld [vmem:[%s8 + $0x1b4] sm:$0xff]
    %v1120 = vld [vmem:[%s8 + $0x1bc] sm:$0xf]
    %v1121 = vld [vmem:[%s8 + $0x1c0] sm:$0xff]
    %v1122 = vld [vmem:[%s8 + $0x1c8] sm:$0xff]
    %v1123 = vld [vmem:[%s8 + $0x1d0] sm:$0xff]
    %v1124 = vld [vmem:[%s8 + $0x1d8] sm:$0xf]
    %v1125 = vld [vmem:[%s8 + $0x1dc] sm:$0xff]
    %v1126 = vld [vmem:[%s8 + $0x1e4] sm:$0xff]
    %v1127 = vld [vmem:[%s8 + $0x1ec] sm:$0xff]
    %v1128 = vld [vmem:[%s8 + $0x1f4] sm:$0xf]
    %v1129 = vld [vmem:[%s8 + $0x1f8] sm:$0xff]
    %v1130 = vld [vmem:[%s8 + $0x200] sm:$0xff]
    %v1131 = vld [vmem:[%s8 + $0x208] sm:$0xff]
    %v1132 = vld [vmem:[%s8 + $0x210] sm:$0xf]
    %v1133 = vld [vmem:[%s8 + $0x214] sm:$0xff]
    %v1134 = vld [vmem:[%s8 + $0x21c] sm:$0xff]
    %v1135 = vld [vmem:[%s8 + $0x224] sm:$0xff]
    %v1136 = vld [vmem:[%s8 + $0x22c] sm:$0xf]
    %v1137 = vld [vmem:[%s8 + $0x230] sm:$0xff]
    %v1138 = vld [vmem:[%s8 + $0x238] sm:$0xff]
    %v1139 = vld [vmem:[%s8 + $0x240] sm:$0xff]
    %v1140 = vld [vmem:[%s8 + $0x248] sm:$0xf]
    %v1141 = vld [vmem:[%s8 + $0x24c] sm:$0xff]
    %v1142 = vld [vmem:[%s8 + $0x254] sm:$0xff]
    %v1143 = vld [vmem:[%s8 + $0x25c] sm:$0xff]
    %v1144 = vld [vmem:[%s8 + $0x264] sm:$0xf]
    %v1145 = vld [vmem:[%s8 + $0x268] sm:$0xff]
    %v1146 = vld [vmem:[%s8 + $0x270] sm:$0xff]
    %v1147 = vld [vmem:[%s8 + $0x278] sm:$0xff]
    %v1148 = vld [vmem:[%s8 + $0x280] sm:$0xf]
    %v1149 = vld [vmem:[%s8 + $0x284] sm:$0xff]
    %v1150 = vld [vmem:[%s8 + $0x28c] sm:$0xff]
    %v1151 = vld [vmem:[%s8 + $0x294] sm:$0xff]
    %v1152 = vld [vmem:[%s8 + $0x29c] sm:$0xf]
    %v1153 = vld [vmem:[%s8 + $0x2a0] sm:$0xff]
    %v1154 = vld [vmem:[%s8 + $0x2a8] sm:$0xff]
    %v1155 = vld [vmem:[%s8 + $0x2b0] sm:$0xff]
    %v1156 = vld [vmem:[%s8 + $0x2b8] sm:$0xf]
    %v1157 = vld [vmem:[%s8 + $0x2bc] sm:$0xff]
    %v1158 = vld [vmem:[%s8 + $0x2c4] sm:$0xff]
    %v1159 = vld [vmem:[%s8 + $0x2cc] sm:$0xff]
    %v1160 = vld [vmem:[%s8 + $0x2d4] sm:$0xf]
    %v1161 = vld [vmem:[%s8 + $0x2d8] sm:$0xff]
    %v1162 = vld [vmem:[%s8 + $0x2e0] sm:$0xff]
    %v1163 = vld [vmem:[%s8 + $0x2e8] sm:$0xff]
    %v1164 = vld [vmem:[%s8 + $0x2f0] sm:$0xf]
    %v1165 = vld [vmem:[%s8 + $0x2f4] sm:$0xff]
    %v1166 = vld [vmem:[%s8 + $0x2fc] sm:$0xff]
    %v1167 = vld [vmem:[%s8 + $0x304] sm:$0xff]
    %v1168 = vld [vmem:[%s8 + $0x30c] sm:$0xf]
    %v1169 = vld [vmem:[%s8 + $0x310] sm:$0xff]
    %v1170 = vld [vmem:[%s8 + $0x318] sm:$0xff]
    %v1171 = vld [vmem:[%s8 + $0x320] sm:$0xff]
    %v1172 = vld [vmem:[%s8 + $0x328] sm:$0xf]
    %v1173 = vld [vmem:[%s8 + $0x32c] sm:$0xff]
    %v1174 = vld [vmem:[%s8 + $0x334] sm:$0xff]
    %v1175 = vld [vmem:[%s8 + $0x33c] sm:$0xff]
    %v1176 = vld [vmem:[%s8 + $0x344] sm:$0xf]
    %v1177 = vld [vmem:[%s8 + $0x348] sm:$0xff]
    %v1178 = vld [vmem:[%s8 + $0x350] sm:$0xff]
    %v1179 = vld [vmem:[%s8 + $0x358] sm:$0xff]
    %v1180 = vld [vmem:[%s8 + $0x360] sm:$0xf]
    %v1181 = vld [vmem:[%s8 + $0x364] sm:$0xff]
    %v1182 = vld [vmem:[%s8 + $0x36c] sm:$0xff]
    %v1183 = vld [vmem:[%s8 + $0x374] sm:$0xff]
    %v1184 = vld [vmem:[%s8 + $0x37c] sm:$0xf]
    %v1185 = vld [vmem:[%s9] sm:$0x7f]
    %v1187 = vperm.slane %v1185, 0
    %v1188 = vperm.slane %v1185, 1
    %v1189 = vperm.slane %v1185, 2
    %v1190 = vperm.slane %v1185, 3
    %v1191 = vperm.slane %v1185, 4
    %v1192 = vperm.slane %v1185, 5
    %v1193 = vperm.slane %v1185, 6
    %v1329 = vunpack.c.l.b16 %v1057
    %v1330 = vunpack.c.h.b16 %v1057
    %v1331 = vunpack.c.l.b16 %v1058
    %v1332 = vunpack.c.h.b16 %v1058
    %v1333 = vunpack.c.l.b16 %v1059
    %v1334 = vunpack.c.h.b16 %v1059
    %v1335 = vunpack.c.l.b16 %v1060
    %v1336 = vunpack.c.l.b16 %v1061
    %v1337 = vunpack.c.h.b16 %v1061
    %v1338 = vunpack.c.l.b16 %v1062
    %v1339 = vunpack.c.h.b16 %v1062
    %v1340 = vunpack.c.l.b16 %v1063
    %v1341 = vunpack.c.h.b16 %v1063
    %v1342 = vunpack.c.l.b16 %v1064
    %v1343 = vunpack.c.l.b16 %v1065
    %v1344 = vunpack.c.h.b16 %v1065
    %v1345 = vunpack.c.l.b16 %v1066
    %v1346 = vunpack.c.h.b16 %v1066
    %v1347 = vunpack.c.l.b16 %v1067
    %v1348 = vunpack.c.h.b16 %v1067
    %v1349 = vunpack.c.l.b16 %v1068
    %v1350 = vunpack.c.l.b16 %v1069
    %v1351 = vunpack.c.h.b16 %v1069
    %v1352 = vunpack.c.l.b16 %v1070
    %v1353 = vunpack.c.h.b16 %v1070
    %v1354 = vunpack.c.l.b16 %v1071
    %v1355 = vunpack.c.h.b16 %v1071
    %v1356 = vunpack.c.l.b16 %v1072
    %v1357 = vunpack.c.l.b16 %v1073
    %v1358 = vunpack.c.h.b16 %v1073
    %v1359 = vunpack.c.l.b16 %v1074
    %v1360 = vunpack.c.h.b16 %v1074
    %v1361 = vunpack.c.l.b16 %v1075
    %v1362 = vunpack.c.h.b16 %v1075
    %v1363 = vunpack.c.l.b16 %v1076
    %v1364 = vunpack.c.l.b16 %v1077
    %v1365 = vunpack.c.h.b16 %v1077
    %v1366 = vunpack.c.l.b16 %v1078
    %v1367 = vunpack.c.h.b16 %v1078
    %v1368 = vunpack.c.l.b16 %v1079
    %v1369 = vunpack.c.h.b16 %v1079
    %v1370 = vunpack.c.l.b16 %v1080
    %v1371 = vunpack.c.l.b16 %v1081
    %v1372 = vunpack.c.h.b16 %v1081
    %v1373 = vunpack.c.l.b16 %v1082
    %v1374 = vunpack.c.h.b16 %v1082
    %v1375 = vunpack.c.l.b16 %v1083
    %v1376 = vunpack.c.h.b16 %v1083
    %v1377 = vunpack.c.l.b16 %v1084
    %v1378 = vunpack.c.l.b16 %v1085
    %v1379 = vunpack.c.h.b16 %v1085
    %v1380 = vunpack.c.l.b16 %v1086
    %v1381 = vunpack.c.h.b16 %v1086
    %v1382 = vunpack.c.l.b16 %v1087
    %v1383 = vunpack.c.h.b16 %v1087
    %v1384 = vunpack.c.l.b16 %v1088
    %v1385 = vunpack.c.l.b16 %v1089
    %v1386 = vunpack.c.h.b16 %v1089
    %v1387 = vunpack.c.l.b16 %v1090
    %v1388 = vunpack.c.h.b16 %v1090
    %v1389 = vunpack.c.l.b16 %v1091
    %v1390 = vunpack.c.h.b16 %v1091
    %v1391 = vunpack.c.l.b16 %v1092
    %v1392 = vunpack.c.l.b16 %v1093
    %v1393 = vunpack.c.h.b16 %v1093
    %v1394 = vunpack.c.l.b16 %v1094
    %v1395 = vunpack.c.h.b16 %v1094
    %v1396 = vunpack.c.l.b16 %v1095
    %v1397 = vunpack.c.h.b16 %v1095
    %v1398 = vunpack.c.l.b16 %v1096
    %v1399 = vunpack.c.l.b16 %v1097
    %v1400 = vunpack.c.h.b16 %v1097
    %v1401 = vunpack.c.l.b16 %v1098
    %v1402 = vunpack.c.h.b16 %v1098
    %v1403 = vunpack.c.l.b16 %v1099
    %v1404 = vunpack.c.h.b16 %v1099
    %v1405 = vunpack.c.l.b16 %v1100
    %v1406 = vunpack.c.l.b16 %v1101
    %v1407 = vunpack.c.h.b16 %v1101
    %v1408 = vunpack.c.l.b16 %v1102
    %v1409 = vunpack.c.h.b16 %v1102
    %v1410 = vunpack.c.l.b16 %v1103
    %v1411 = vunpack.c.h.b16 %v1103
    %v1412 = vunpack.c.l.b16 %v1104
    %v1413 = vunpack.c.l.b16 %v1105
    %v1414 = vunpack.c.h.b16 %v1105
    %v1415 = vunpack.c.l.b16 %v1106
    %v1416 = vunpack.c.h.b16 %v1106
    %v1417 = vunpack.c.l.b16 %v1107
    %v1418 = vunpack.c.h.b16 %v1107
    %v1419 = vunpack.c.l.b16 %v1108
    %v1420 = vunpack.c.l.b16 %v1109
    %v1421 = vunpack.c.h.b16 %v1109
    %v1422 = vunpack.c.l.b16 %v1110
    %v1423 = vunpack.c.h.b16 %v1110
    %v1424 = vunpack.c.l.b16 %v1111
    %v1425 = vunpack.c.h.b16 %v1111
    %v1426 = vunpack.c.l.b16 %v1112
    %v1427 = vunpack.c.l.b16 %v1113
    %v1428 = vunpack.c.h.b16 %v1113
    %v1429 = vunpack.c.l.b16 %v1114
    %v1430 = vunpack.c.h.b16 %v1114
    %v1431 = vunpack.c.l.b16 %v1115
    %v1432 = vunpack.c.h.b16 %v1115
    %v1433 = vunpack.c.l.b16 %v1116
    %v1434 = vunpack.c.l.b16 %v1117
    %v1435 = vunpack.c.h.b16 %v1117
    %v1436 = vunpack.c.l.b16 %v1118
    %v1437 = vunpack.c.h.b16 %v1118
    %v1438 = vunpack.c.l.b16 %v1119
    %v1439 = vunpack.c.h.b16 %v1119
    %v1440 = vunpack.c.l.b16 %v1120
    %v1441 = vunpack.c.l.b16 %v1121
    %v1442 = vunpack.c.h.b16 %v1121
    %v1443 = vunpack.c.l.b16 %v1122
    %v1444 = vunpack.c.h.b16 %v1122
    %v1445 = vunpack.c.l.b16 %v1123
    %v1446 = vunpack.c.h.b16 %v1123
    %v1447 = vunpack.c.l.b16 %v1124
    %v1448 = vunpack.c.l.b16 %v1125
    %v1449 = vunpack.c.h.b16 %v1125
    %v1450 = vunpack.c.l.b16 %v1126
    %v1451 = vunpack.c.h.b16 %v1126
    %v1452 = vunpack.c.l.b16 %v1127
    %v1453 = vunpack.c.h.b16 %v1127
    %v1454 = vunpack.c.l.b16 %v1128
    %v1455 = vunpack.c.l.b16 %v1129
    %v1456 = vunpack.c.h.b16 %v1129
    %v1457 = vunpack.c.l.b16 %v1130
    %v1458 = vunpack.c.h.b16 %v1130
    %v1459 = vunpack.c.l.b16 %v1131
    %v1460 = vunpack.c.h.b16 %v1131
    %v1461 = vunpack.c.l.b16 %v1132
    %v1462 = vunpack.c.l.b16 %v1133
    %v1463 = vunpack.c.h.b16 %v1133
    %v1464 = vunpack.c.l.b16 %v1134
    %v1465 = vunpack.c.h.b16 %v1134
    %v1466 = vunpack.c.l.b16 %v1135
    %v1467 = vunpack.c.h.b16 %v1135
    %v1468 = vunpack.c.l.b16 %v1136
    %v1469 = vunpack.c.l.b16 %v1137
    %v1470 = vunpack.c.h.b16 %v1137
    %v1471 = vunpack.c.l.b16 %v1138
    %v1472 = vunpack.c.h.b16 %v1138
    %v1473 = vunpack.c.l.b16 %v1139
    %v1474 = vunpack.c.h.b16 %v1139
    %v1475 = vunpack.c.l.b16 %v1140
    %v1476 = vunpack.c.l.b16 %v1141
    %v1477 = vunpack.c.h.b16 %v1141
    %v1478 = vunpack.c.l.b16 %v1142
    %v1479 = vunpack.c.h.b16 %v1142
    %v1480 = vunpack.c.l.b16 %v1143
    %v1481 = vunpack.c.h.b16 %v1143
    %v1482 = vunpack.c.l.b16 %v1144
    %v1483 = vunpack.c.l.b16 %v1145
    %v1484 = vunpack.c.h.b16 %v1145
    %v1485 = vunpack.c.l.b16 %v1146
    %v1486 = vunpack.c.h.b16 %v1146
    %v1487 = vunpack.c.l.b16 %v1147
    %v1488 = vunpack.c.h.b16 %v1147
    %v1489 = vunpack.c.l.b16 %v1148
    %v1490 = vunpack.c.l.b16 %v1149
    %v1491 = vunpack.c.h.b16 %v1149
    %v1492 = vunpack.c.l.b16 %v1150
    %v1493 = vunpack.c.h.b16 %v1150
    %v1494 = vunpack.c.l.b16 %v1151
    %v1495 = vunpack.c.h.b16 %v1151
    %v1496 = vunpack.c.l.b16 %v1152
    %v1497 = vunpack.c.l.b16 %v1153
    %v1498 = vunpack.c.h.b16 %v1153
    %v1499 = vunpack.c.l.b16 %v1154
    %v1500 = vunpack.c.h.b16 %v1154
    %v1501 = vunpack.c.l.b16 %v1155
    %v1502 = vunpack.c.h.b16 %v1155
    %v1503 = vunpack.c.l.b16 %v1156
    %v1504 = vunpack.c.l.b16 %v1157
    %v1505 = vunpack.c.h.b16 %v1157
    %v1506 = vunpack.c.l.b16 %v1158
    %v1507 = vunpack.c.h.b16 %v1158
    %v1508 = vunpack.c.l.b16 %v1159
    %v1509 = vunpack.c.h.b16 %v1159
    %v1510 = vunpack.c.l.b16 %v1160
    %v1511 = vunpack.c.l.b16 %v1161
    %v1512 = vunpack.c.h.b16 %v1161
    %v1513 = vunpack.c.l.b16 %v1162
    %v1514 = vunpack.c.h.b16 %v1162
    %v1515 = vunpack.c.l.b16 %v1163
    %v1516 = vunpack.c.h.b16 %v1163
    %v1517 = vunpack.c.l.b16 %v1164
    %v1518 = vunpack.c.l.b16 %v1165
    %v1519 = vunpack.c.h.b16 %v1165
    %v1520 = vunpack.c.l.b16 %v1166
    %v1521 = vunpack.c.h.b16 %v1166
    %v1522 = vunpack.c.l.b16 %v1167
    %v1523 = vunpack.c.h.b16 %v1167
    %v1524 = vunpack.c.l.b16 %v1168
    %v1525 = vunpack.c.l.b16 %v1169
    %v1526 = vunpack.c.h.b16 %v1169
    %v1527 = vunpack.c.l.b16 %v1170
    %v1528 = vunpack.c.h.b16 %v1170
    %v1529 = vunpack.c.l.b16 %v1171
    %v1530 = vunpack.c.h.b16 %v1171
    %v1531 = vunpack.c.l.b16 %v1172
    %v1532 = vunpack.c.l.b16 %v1173
    %v1533 = vunpack.c.h.b16 %v1173
    %v1534 = vunpack.c.l.b16 %v1174
    %v1535 = vunpack.c.h.b16 %v1174
    %v1536 = vunpack.c.l.b16 %v1175
    %v1537 = vunpack.c.h.b16 %v1175
    %v1538 = vunpack.c.l.b16 %v1176
    %v1539 = vunpack.c.l.b16 %v1177
    %v1540 = vunpack.c.h.b16 %v1177
    %v1541 = vunpack.c.l.b16 %v1178
    %v1542 = vunpack.c.h.b16 %v1178
    %v1543 = vunpack.c.l.b16 %v1179
    %v1544 = vunpack.c.h.b16 %v1179
    %v1545 = vunpack.c.l.b16 %v1180
    %v1546 = vunpack.c.l.b16 %v1181
    %v1547 = vunpack.c.h.b16 %v1181
    %v1548 = vunpack.c.l.b16 %v1182
    %v1549 = vunpack.c.h.b16 %v1182
    %v1550 = vunpack.c.l.b16 %v1183
    %v1551 = vunpack.c.h.b16 %v1183
    %v1552 = vunpack.c.l.b16 %v1184
    %v1553 = vpack.c.b16 %v1336, %v1329
    %v1554 = vpack.c.b16 %v1337, %v1330
    %v1555 = vpack.c.b16 %v1338, %v1331
    %v1556 = vpack.c.b16 %v1339, %v1332
    %v1557 = vpack.c.b16 %v1340, %v1333
    %v1558 = vpack.c.b16 %v1341, %v1334
    %v1559 = vpack.c.b16 %v1342, %v1335
    %v1560 = vpack.c.b16 %v1350, %v1343
    %v1561 = vpack.c.b16 %v1351, %v1344
    %v1562 = vpack.c.b16 %v1352, %v1345
    %v1563 = vpack.c.b16 %v1353, %v1346
    %v1564 = vpack.c.b16 %v1354, %v1347
    %v1565 = vpack.c.b16 %v1355, %v1348
    %v1566 = vpack.c.b16 %v1356, %v1349
    %v1567 = vpack.c.b16 %v1364, %v1357
    %v1568 = vpack.c.b16 %v1365, %v1358
    %v1569 = vpack.c.b16 %v1366, %v1359
    %v1570 = vpack.c.b16 %v1367, %v1360
    %v1571 = vpack.c.b16 %v1368, %v1361
    %v1572 = vpack.c.b16 %v1369, %v1362
    %v1573 = vpack.c.b16 %v1370, %v1363
    %v1574 = vpack.c.b16 %v1378, %v1371
    %v1575 = vpack.c.b16 %v1379, %v1372
    %v1576 = vpack.c.b16 %v1380, %v1373
    %v1577 = vpack.c.b16 %v1381, %v1374
    %v1578 = vpack.c.b16 %v1382, %v1375
    %v1579 = vpack.c.b16 %v1383, %v1376
    %v1580 = vpack.c.b16 %v1384, %v1377
    %v1581 = vpack.c.b16 %v1392, %v1385
    %v1582 = vpack.c.b16 %v1393, %v1386
    %v1583 = vpack.c.b16 %v1394, %v1387
    %v1584 = vpack.c.b16 %v1395, %v1388
    %v1585 = vpack.c.b16 %v1396, %v1389
    %v1586 = vpack.c.b16 %v1397, %v1390
    %v1587 = vpack.c.b16 %v1398, %v1391
    %v1588 = vpack.c.b16 %v1406, %v1399
    %v1589 = vpack.c.b16 %v1407, %v1400
    %v1590 = vpack.c.b16 %v1408, %v1401
    %v1591 = vpack.c.b16 %v1409, %v1402
    %v1592 = vpack.c.b16 %v1410, %v1403
    %v1593 = vpack.c.b16 %v1411, %v1404
    %v1594 = vpack.c.b16 %v1412, %v1405
    %v1595 = vpack.c.b16 %v1420, %v1413
    %v1596 = vpack.c.b16 %v1421, %v1414
    %v1597 = vpack.c.b16 %v1422, %v1415
    %v1598 = vpack.c.b16 %v1423, %v1416
    %v1599 = vpack.c.b16 %v1424, %v1417
    %v1600 = vpack.c.b16 %v1425, %v1418
    %v1601 = vpack.c.b16 %v1426, %v1419
    %v1602 = vpack.c.b16 %v1434, %v1427
    %v1603 = vpack.c.b16 %v1435, %v1428
    %v1604 = vpack.c.b16 %v1436, %v1429
    %v1605 = vpack.c.b16 %v1437, %v1430
    %v1606 = vpack.c.b16 %v1438, %v1431
    %v1607 = vpack.c.b16 %v1439, %v1432
    %v1608 = vpack.c.b16 %v1440, %v1433
    %v1609 = vpack.c.b16 %v1448, %v1441
    %v1610 = vpack.c.b16 %v1449, %v1442
    %v1611 = vpack.c.b16 %v1450, %v1443
    %v1612 = vpack.c.b16 %v1451, %v1444
    %v1613 = vpack.c.b16 %v1452, %v1445
    %v1614 = vpack.c.b16 %v1453, %v1446
    %v1615 = vpack.c.b16 %v1454, %v1447
    %v1616 = vpack.c.b16 %v1462, %v1455
    %v1617 = vpack.c.b16 %v1463, %v1456
    %v1618 = vpack.c.b16 %v1464, %v1457
    %v1619 = vpack.c.b16 %v1465, %v1458
    %v1620 = vpack.c.b16 %v1466, %v1459
    %v1621 = vpack.c.b16 %v1467, %v1460
    %v1622 = vpack.c.b16 %v1468, %v1461
    %v1623 = vpack.c.b16 %v1476, %v1469
    %v1624 = vpack.c.b16 %v1477, %v1470
    %v1625 = vpack.c.b16 %v1478, %v1471
    %v1626 = vpack.c.b16 %v1479, %v1472
    %v1627 = vpack.c.b16 %v1480, %v1473
    %v1628 = vpack.c.b16 %v1481, %v1474
    %v1629 = vpack.c.b16 %v1482, %v1475
    %v1630 = vpack.c.b16 %v1490, %v1483
    %v1631 = vpack.c.b16 %v1491, %v1484
    %v1632 = vpack.c.b16 %v1492, %v1485
    %v1633 = vpack.c.b16 %v1493, %v1486
    %v1634 = vpack.c.b16 %v1494, %v1487
    %v1635 = vpack.c.b16 %v1495, %v1488
    %v1636 = vpack.c.b16 %v1496, %v1489
    %v1637 = vpack.c.b16 %v1504, %v1497
    %v1638 = vpack.c.b16 %v1505, %v1498
    %v1639 = vpack.c.b16 %v1506, %v1499
    %v1640 = vpack.c.b16 %v1507, %v1500
    %v1641 = vpack.c.b16 %v1508, %v1501
    %v1642 = vpack.c.b16 %v1509, %v1502
    %v1643 = vpack.c.b16 %v1510, %v1503
    %v1644 = vpack.c.b16 %v1518, %v1511
    %v1645 = vpack.c.b16 %v1519, %v1512
    %v1646 = vpack.c.b16 %v1520, %v1513
    %v1647 = vpack.c.b16 %v1521, %v1514
    %v1648 = vpack.c.b16 %v1522, %v1515
    %v1649 = vpack.c.b16 %v1523, %v1516
    %v1650 = vpack.c.b16 %v1524, %v1517
    %v1651 = vpack.c.b16 %v1532, %v1525
    %v1652 = vpack.c.b16 %v1533, %v1526
    %v1653 = vpack.c.b16 %v1534, %v1527
    %v1654 = vpack.c.b16 %v1535, %v1528
    %v1655 = vpack.c.b16 %v1536, %v1529
    %v1656 = vpack.c.b16 %v1537, %v1530
    %v1657 = vpack.c.b16 %v1538, %v1531
    %v1658 = vpack.c.b16 %v1546, %v1539
    %v1659 = vpack.c.b16 %v1547, %v1540
    %v1660 = vpack.c.b16 %v1548, %v1541
    %v1661 = vpack.c.b16 %v1549, %v1542
    %v1662 = vpack.c.b16 %v1550, %v1543
    %v1663 = vpack.c.b16 %v1551, %v1544
    %v1664 = vpack.c.b16 %v1552, %v1545
    %1777 = vmatpush.bf16.msra.mxu0 %v1602
    %1778 = vmatpush.bf16.msra.mxu0 %v1595
    %1779 = vmatpush.bf16.msra.mxu0 %v1588
    %1780 = vmatpush.bf16.msra.mxu0 %v1581
    %1781 = vmatpush.bf16.msra.mxu0 %v1574
    %1782 = vmatpush.bf16.msra.mxu0 %v1567
    %1783 = vmatpush.bf16.msra.mxu0 %v1560
    %1784 = vmatpush.bf16.msra.mxu0 %v1553
    %1785 = vmatmul.bf16.gmra.mxu0 %v1055
    %v1786 = vpop.f32.mrf.mxu0
    %v1787 = vadd.f32 %v1187, %v1786
    %v1788 = vpop.f32.mrf.mxu0
    %1789 = vdwg.mxu0
    %1790 = vmatpush.bf16.msra.mxu0 %v1658
    %1791 = vmatpush.bf16.msra.mxu0 %v1651
    %1792 = vmatpush.bf16.msra.mxu0 %v1644
    %1793 = vmatpush.bf16.msra.mxu0 %v1637
    %1794 = vmatpush.bf16.msra.mxu0 %v1630
    %1795 = vmatpush.bf16.msra.mxu0 %v1623
    %1796 = vmatpush.bf16.msra.mxu0 %v1616
    %1797 = vmatpush.bf16.msra.mxu0 %v1609
    %1798 = vmatmul.bf16.gmra.mxu0 %v1056
    %v1799 = vpop.f32.mrf.mxu0
    %v1800 = vadd.f32 %v1787, %v1799
    %v1801 = vpop.f32.mrf.mxu0
    %1802 = vdwg.mxu0
    %1803 = vmatpush.bf16.msra.mxu0 %v1603
    %1804 = vmatpush.bf16.msra.mxu0 %v1596
    %1805 = vmatpush.bf16.msra.mxu0 %v1589
    %1806 = vmatpush.bf16.msra.mxu0 %v1582
    %1807 = vmatpush.bf16.msra.mxu0 %v1575
    %1808 = vmatpush.bf16.msra.mxu0 %v1568
    %1809 = vmatpush.bf16.msra.mxu0 %v1561
    %1810 = vmatpush.bf16.msra.mxu0 %v1554
    %1811 = vmatmul.bf16.gmra.mxu0 %v1055
    %v1812 = vpop.f32.mrf.mxu0
    %v1813 = vadd.f32 %v1188, %v1812
    %v1814 = vpop.f32.mrf.mxu0
    %1815 = vdwg.mxu0
    %1816 = vmatpush.bf16.msra.mxu0 %v1659
    %1817 = vmatpush.bf16.msra.mxu0 %v1652
    %1818 = vmatpush.bf16.msra.mxu0 %v1645
    %1819 = vmatpush.bf16.msra.mxu0 %v1638
    %1820 = vmatpush.bf16.msra.mxu0 %v1631
    %1821 = vmatpush.bf16.msra.mxu0 %v1624
    %1822 = vmatpush.bf16.msra.mxu0 %v1617
    %1823 = vmatpush.bf16.msra.mxu0 %v1610
    %1824 = vmatmul.bf16.gmra.mxu0 %v1056
    %v1825 = vpop.f32.mrf.mxu0
    %v1826 = vadd.f32 %v1813, %v1825
    %v1827 = vpop.f32.mrf.mxu0
    %1828 = vdwg.mxu0
    %1829 = vmatpush.bf16.msra.mxu0 %v1604
    %1830 = vmatpush.bf16.msra.mxu0 %v1597
    %1831 = vmatpush.bf16.msra.mxu0 %v1590
    %1832 = vmatpush.bf16.msra.mxu0 %v1583
    %1833 = vmatpush.bf16.msra.mxu0 %v1576
    %1834 = vmatpush.bf16.msra.mxu0 %v1569
    %1835 = vmatpush.bf16.msra.mxu0 %v1562
    %1836 = vmatpush.bf16.msra.mxu0 %v1555
    %1837 = vmatmul.bf16.gmra.mxu0 %v1055
    %v1838 = vpop.f32.mrf.mxu0
    %v1839 = vadd.f32 %v1189, %v1838
    %v1840 = vpop.f32.mrf.mxu0
    %1841 = vdwg.mxu0
    %1842 = vmatpush.bf16.msra.mxu0 %v1660
    %1843 = vmatpush.bf16.msra.mxu0 %v1653
    %1844 = vmatpush.bf16.msra.mxu0 %v1646
    %1845 = vmatpush.bf16.msra.mxu0 %v1639
    %1846 = vmatpush.bf16.msra.mxu0 %v1632
    %1847 = vmatpush.bf16.msra.mxu0 %v1625
    %1848 = vmatpush.bf16.msra.mxu0 %v1618
    %1849 = vmatpush.bf16.msra.mxu0 %v1611
    %1850 = vmatmul.bf16.gmra.mxu0 %v1056
    %v1851 = vpop.f32.mrf.mxu0
    %v1852 = vadd.f32 %v1839, %v1851
    %v1853 = vpop.f32.mrf.mxu0
    %1854 = vdwg.mxu0
    %1855 = vmatpush.bf16.msra.mxu0 %v1605
    %1856 = vmatpush.bf16.msra.mxu0 %v1598
    %1857 = vmatpush.bf16.msra.mxu0 %v1591
    %1858 = vmatpush.bf16.msra.mxu0 %v1584
    %1859 = vmatpush.bf16.msra.mxu0 %v1577
    %1860 = vmatpush.bf16.msra.mxu0 %v1570
    %1861 = vmatpush.bf16.msra.mxu0 %v1563
    %1862 = vmatpush.bf16.msra.mxu0 %v1556
    %1863 = vmatmul.bf16.gmra.mxu0 %v1055
    %v1864 = vpop.f32.mrf.mxu0
    %v1865 = vadd.f32 %v1190, %v1864
    %v1866 = vpop.f32.mrf.mxu0
    %1867 = vdwg.mxu0
    %1868 = vmatpush.bf16.msra.mxu0 %v1661
    %1869 = vmatpush.bf16.msra.mxu0 %v1654
    %1870 = vmatpush.bf16.msra.mxu0 %v1647
    %1871 = vmatpush.bf16.msra.mxu0 %v1640
    %1872 = vmatpush.bf16.msra.mxu0 %v1633
    %1873 = vmatpush.bf16.msra.mxu0 %v1626
    %1874 = vmatpush.bf16.msra.mxu0 %v1619
    %1875 = vmatpush.bf16.msra.mxu0 %v1612
    %1876 = vmatmul.bf16.gmra.mxu0 %v1056
    %v1877 = vpop.f32.mrf.mxu0
    %v1878 = vadd.f32 %v1865, %v1877
    %v1879 = vpop.f32.mrf.mxu0
    %1880 = vdwg.mxu0
    %1881 = vmatpush.bf16.msra.mxu0 %v1606
    %1882 = vmatpush.bf16.msra.mxu0 %v1599
    %1883 = vmatpush.bf16.msra.mxu0 %v1592
    %1884 = vmatpush.bf16.msra.mxu0 %v1585
    %1885 = vmatpush.bf16.msra.mxu0 %v1578
    %1886 = vmatpush.bf16.msra.mxu0 %v1571
    %1887 = vmatpush.bf16.msra.mxu0 %v1564
    %1888 = vmatpush.bf16.msra.mxu0 %v1557
    %1889 = vmatmul.bf16.gmra.mxu0 %v1055
    %v1890 = vpop.f32.mrf.mxu0
    %v1891 = vadd.f32 %v1191, %v1890
    %v1892 = vpop.f32.mrf.mxu0
    %1893 = vdwg.mxu0
    %1894 = vmatpush.bf16.msra.mxu0 %v1662
    %1895 = vmatpush.bf16.msra.mxu0 %v1655
    %1896 = vmatpush.bf16.msra.mxu0 %v1648
    %1897 = vmatpush.bf16.msra.mxu0 %v1641
    %1898 = vmatpush.bf16.msra.mxu0 %v1634
    %1899 = vmatpush.bf16.msra.mxu0 %v1627
    %1900 = vmatpush.bf16.msra.mxu0 %v1620
    %1901 = vmatpush.bf16.msra.mxu0 %v1613
    %1902 = vmatmul.bf16.gmra.mxu0 %v1056
    %v1903 = vpop.f32.mrf.mxu0
    %v1904 = vadd.f32 %v1891, %v1903
    %v1905 = vpop.f32.mrf.mxu0
    %1906 = vdwg.mxu0
    %1907 = vmatpush.bf16.msra.mxu0 %v1607
    %1908 = vmatpush.bf16.msra.mxu0 %v1600
    %1909 = vmatpush.bf16.msra.mxu0 %v1593
    %1910 = vmatpush.bf16.msra.mxu0 %v1586
    %1911 = vmatpush.bf16.msra.mxu0 %v1579
    %1912 = vmatpush.bf16.msra.mxu0 %v1572
    %1913 = vmatpush.bf16.msra.mxu0 %v1565
    %1914 = vmatpush.bf16.msra.mxu0 %v1558
    %1915 = vmatmul.bf16.gmra.mxu0 %v1055
    %v1916 = vpop.f32.mrf.mxu0
    %v1917 = vadd.f32 %v1192, %v1916
    %v1918 = vpop.f32.mrf.mxu0
    %1919 = vdwg.mxu0
    %1920 = vmatpush.bf16.msra.mxu0 %v1663
    %1921 = vmatpush.bf16.msra.mxu0 %v1656
    %1922 = vmatpush.bf16.msra.mxu0 %v1649
    %1923 = vmatpush.bf16.msra.mxu0 %v1642
    %1924 = vmatpush.bf16.msra.mxu0 %v1635
    %1925 = vmatpush.bf16.msra.mxu0 %v1628
    %1926 = vmatpush.bf16.msra.mxu0 %v1621
    %1927 = vmatpush.bf16.msra.mxu0 %v1614
    %1928 = vmatmul.bf16.gmra.mxu0 %v1056
    %v1929 = vpop.f32.mrf.mxu0
    %v1930 = vadd.f32 %v1917, %v1929
    %v1931 = vpop.f32.mrf.mxu0
    %1932 = vdwg.mxu0
    %1933 = vmatpush.bf16.msra.mxu0 %v1608
    %1934 = vmatpush.bf16.msra.mxu0 %v1601
    %1935 = vmatpush.bf16.msra.mxu0 %v1594
    %1936 = vmatpush.bf16.msra.mxu0 %v1587
    %1937 = vmatpush.bf16.msra.mxu0 %v1580
    %1938 = vmatpush.bf16.msra.mxu0 %v1573
    %1939 = vmatpush.bf16.msra.mxu0 %v1566
    %1940 = vmatpush.bf16.msra.mxu0 %v1559
    %1941 = vmatmul.bf16.gmra.mxu0 %v1055
    %v1942 = vpop.f32.mrf.mxu0
    %v1943 = vadd.f32 %v1193, %v1942
    %v1944 = vpop.f32.mrf.mxu0
    %1945 = vdwg.mxu0
    %1946 = vmatpush.bf16.msra.mxu0 %v1664
    %1947 = vmatpush.bf16.msra.mxu0 %v1657
    %1948 = vmatpush.bf16.msra.mxu0 %v1650
    %1949 = vmatpush.bf16.msra.mxu0 %v1643
    %1950 = vmatpush.bf16.msra.mxu0 %v1636
    %1951 = vmatpush.bf16.msra.mxu0 %v1629
    %1952 = vmatpush.bf16.msra.mxu0 %v1622
    %1953 = vmatpush.bf16.msra.mxu0 %v1615
    %1954 = vmatmul.bf16.gmra.mxu0 %v1056
    %v1955 = vpop.f32.mrf.mxu0
    %v1956 = vadd.f32 %v1943, %v1955
    %v1957 = vpop.f32.mrf.mxu0
    %1958 = vdwg.mxu0
    %v1959 = vxor.u32 %v1800, 2147483648
    %v1960 = vxor.u32 %v1826, 2147483648
    %v1961 = vxor.u32 %v1852, 2147483648
    %v1962 = vxor.u32 %v1878, 2147483648
    %v1963 = vxor.u32 %v1904, 2147483648
    %v1964 = vxor.u32 %v1930, 2147483648
    %v1965 = vxor.u32 %v1956, 2147483648
    %v1966 = vmul.f32 %v1959, 1.442695
    %v1967 = vpow.pop %v1966
    %v1968 = vmul.f32 %v1960, 1.442695
    %v1969 = vpow.pop %v1968
    %v1970 = vmul.f32 %v1961, 1.442695
    %v1971 = vpow.pop %v1970
    %v1972 = vmul.f32 %v1962, 1.442695
    %v1973 = vpow.pop %v1972
    %v1974 = vmul.f32 %v1963, 1.442695
    %v1975 = vpow.pop %v1974
    %v1976 = vmul.f32 %v1964, 1.442695
    %v1977 = vpow.pop %v1976
    %v1978 = vmul.f32 %v1965, 1.442695
    %v1979 = vpow.pop %v1978
    %v1980 = vadd.f32 %v1967, 1.0
    %v1981 = vadd.f32 %v1969, 1.0
    %v1982 = vadd.f32 %v1971, 1.0
    %v1983 = vadd.f32 %v1973, 1.0
    %v1984 = vadd.f32 %v1975, 1.0
    %v1985 = vadd.f32 %v1977, 1.0
    %v1986 = vadd.f32 %v1979, 1.0
    %v1987 = vrcp.pop %v1980
    %v1988 = vmul.f32 %v1980, %v1987
    %v1989 = vsub.f32 1.0, %v1988
    %v1990 = vmul.f32 %v1987, %v1989
    %v1991 = vadd.f32 %v1987, %v1990
    %vm1992 = vweird.f32 %v1980
    %vm1993 = vweird.f32 %v1987
    %vm1994 = vmor %vm1992, %vm1993
    %v1995 = vsel %vm1994, %v1987, %v1991
    %v1996 = vand.u32 2147483647, %v1980
    %vm1997 = vcmp.eq.f32.partialorder %v1996, 8.507059e+37
    %v1998 = vand.u32 %v1980, 2147483648
    %v1999 = vor.u32 1.1754944e-38, %v1998
    %v2000 = vsel %vm1997, %v1999, %v1995
    %v2001 = vmul.f32 1.0, %v2000
    %v2002 = vrcp.pop %v1981
    %v2003 = vmul.f32 %v1981, %v2002
    %v2004 = vsub.f32 1.0, %v2003
    %v2005 = vmul.f32 %v2002, %v2004
    %v2006 = vadd.f32 %v2002, %v2005
    %vm2007 = vweird.f32 %v1981
    %vm2008 = vweird.f32 %v2002
    %vm2009 = vmor %vm2007, %vm2008
    %v2010 = vsel %vm2009, %v2002, %v2006
    %v2011 = vand.u32 2147483647, %v1981
    %vm2012 = vcmp.eq.f32.partialorder %v2011, 8.507059e+37
    %v2013 = vand.u32 %v1981, 2147483648
    %v2014 = vor.u32 1.1754944e-38, %v2013
    %v2015 = vsel %vm2012, %v2014, %v2010
    %v2016 = vmul.f32 1.0, %v2015
    %v2017 = vrcp.pop %v1982
    %v2018 = vmul.f32 %v1982, %v2017
    %v2019 = vsub.f32 1.0, %v2018
    %v2020 = vmul.f32 %v2017, %v2019
    %v2021 = vadd.f32 %v2017, %v2020
    %vm2022 = vweird.f32 %v1982
    %vm2023 = vweird.f32 %v2017
    %vm2024 = vmor %vm2022, %vm2023
    %v2025 = vsel %vm2024, %v2017, %v2021
    %v2026 = vand.u32 2147483647, %v1982
    %vm2027 = vcmp.eq.f32.partialorder %v2026, 8.507059e+37
    %v2028 = vand.u32 %v1982, 2147483648
    %v2029 = vor.u32 1.1754944e-38, %v2028
    %v2030 = vsel %vm2027, %v2029, %v2025
    %v2031 = vmul.f32 1.0, %v2030
    %v2032 = vrcp.pop %v1983
    %v2033 = vmul.f32 %v1983, %v2032
    %v2034 = vsub.f32 1.0, %v2033
    %v2035 = vmul.f32 %v2032, %v2034
    %v2036 = vadd.f32 %v2032, %v2035
    %vm2037 = vweird.f32 %v1983
    %vm2038 = vweird.f32 %v2032
    %vm2039 = vmor %vm2037, %vm2038
    %v2040 = vsel %vm2039, %v2032, %v2036
    %v2041 = vand.u32 2147483647, %v1983
    %vm2042 = vcmp.eq.f32.partialorder %v2041, 8.507059e+37
    %v2043 = vand.u32 %v1983, 2147483648
    %v2044 = vor.u32 1.1754944e-38, %v2043
    %v2045 = vsel %vm2042, %v2044, %v2040
    %v2046 = vmul.f32 1.0, %v2045
    %v2047 = vrcp.pop %v1984
    %v2048 = vmul.f32 %v1984, %v2047
    %v2049 = vsub.f32 1.0, %v2048
    %v2050 = vmul.f32 %v2047, %v2049
    %v2051 = vadd.f32 %v2047, %v2050
    %vm2052 = vweird.f32 %v1984
    %vm2053 = vweird.f32 %v2047
    %vm2054 = vmor %vm2052, %vm2053
    %v2055 = vsel %vm2054, %v2047, %v2051
    %v2056 = vand.u32 2147483647, %v1984
    %vm2057 = vcmp.eq.f32.partialorder %v2056, 8.507059e+37
    %v2058 = vand.u32 %v1984, 2147483648
    %v2059 = vor.u32 1.1754944e-38, %v2058
    %v2060 = vsel %vm2057, %v2059, %v2055
    %v2061 = vmul.f32 1.0, %v2060
    %v2062 = vrcp.pop %v1985
    %v2063 = vmul.f32 %v1985, %v2062
    %v2064 = vsub.f32 1.0, %v2063
    %v2065 = vmul.f32 %v2062, %v2064
    %v2066 = vadd.f32 %v2062, %v2065
    %vm2067 = vweird.f32 %v1985
    %vm2068 = vweird.f32 %v2062
    %vm2069 = vmor %vm2067, %vm2068
    %v2070 = vsel %vm2069, %v2062, %v2066
    %v2071 = vand.u32 2147483647, %v1985
    %vm2072 = vcmp.eq.f32.partialorder %v2071, 8.507059e+37
    %v2073 = vand.u32 %v1985, 2147483648
    %v2074 = vor.u32 1.1754944e-38, %v2073
    %v2075 = vsel %vm2072, %v2074, %v2070
    %v2076 = vmul.f32 1.0, %v2075
    %v2077 = vrcp.pop %v1986
    %v2078 = vmul.f32 %v1986, %v2077
    %v2079 = vsub.f32 1.0, %v2078
    %v2080 = vmul.f32 %v2077, %v2079
    %v2081 = vadd.f32 %v2077, %v2080
    %vm2082 = vweird.f32 %v1986
    %vm2083 = vweird.f32 %v2077
    %vm2084 = vmor %vm2082, %vm2083
    %v2085 = vsel %vm2084, %v2077, %v2081
    %v2086 = vand.u32 2147483647, %v1986
    %vm2087 = vcmp.eq.f32.partialorder %v2086, 8.507059e+37
    %v2088 = vand.u32 %v1986, 2147483648
    %v2089 = vor.u32 1.1754944e-38, %v2088
    %v2090 = vsel %vm2087, %v2089, %v2085
    %v2091 = vmul.f32 1.0, %v2090
    %v2092 = vpack.c.bf16 %v2016, %v2001
    %v2093 = vpack.c.bf16 %v2046, %v2031
    %v2094 = vpack.c.bf16 %v2076, %v2061
    %v2095 = vpack.c.bf16 %v2091, %v2091
    %2096 = vst [vmem:[#allocation2] sm:$0xff] %v2092
    %2097 = vst [vmem:[#allocation2 + $0x8] sm:$0xff] %v2093
    %2098 = vst [vmem:[#allocation2 + $0x10] sm:$0xff] %v2094
    %vm2099 = vcmask 125952
    %2100 = vst.msk [vmem:[#allocation2 + $0x18] sm:$0xf] %vm2099, %v2095
    %vm2101 = vcmask 261120
    %2102 = vst.msk [vmem:[%s11] sm:$0xff] %vm2101, %v992
    // Predicated region
    $region42: #{vae_forward.1} parent=1 // pred_check
      _
    $region43: #{vae_forward.1} parent=1 // pred_check_branch
      %2104 = sbr.rel (0) target = $region45
    $region44: #{vae_forward.1} parent=1 // pred_region
      %2106 = vsyncadd [#allocation3], 0
      %s2108 = sshll.u32 [#allocation2], 4
      %s2109 = int_to_ptr.vmem [resolvable:$true] %s2108
      %s2110 = sshll.u32 %s10, 4
      %s2111 = int_to_ptr.hbm [resolvable:$true] %s2110
      %2113 = dma.vmem_to_hbm [thread:$0]  %s2109, 448, %s2111, [#allocation3]
    $region45: #{vae_forward.1} parent=1 // pred_fallthru
      _
    // Predicated region
    $region46: #{vae_forward.1} parent=1 // pred_check
      _
    $region47: #{vae_forward.1} parent=1 // pred_check_branch
      %2115 = sbr.rel (0) target = $region49
    $region48: #{vae_forward.1} parent=1 // pred_region
      _
    $region49: #{vae_forward.1} parent=1 // pred_fallthru
      _
    // Predicated region
    $region50: #{vae_forward.1} parent=1 // pred_check
      _
    $region51: #{vae_forward.1} parent=1 // pred_check_branch
      %2117 = sbr.rel (0) target = $region53
    $region52: #{vae_forward.1} parent=1 // pred_region
      %2119 = dma.done [#allocation3], 448
    $region53: #{vae_forward.1} parent=1 // pred_fallthru
      _
    // Predicated region
    $region54: #{vae_forward.1} parent=1 // pred_check
      _
    $region55: #{vae_forward.1} parent=1 // pred_check_branch
      %2121 = sbr.rel (0) target = $region57
    $region56: #{vae_forward.1} parent=1 // pred_region
      _
    $region57: #{vae_forward.1} parent=1 // pred_fallthru
      _
    %2122 = vsyncpa [#allocation3], 1

</llo_original>
